<compile_context>
chip_gen: v5e
topology: v5e:2x2
jax: 0.10.0
libtpu: 0.0.40
codegen_flags: <defaults>
</compile_context>

<pallas_src>
import functools

import numpy as np
import jax
import jax.numpy as jnp
from jax.experimental import pallas as pl
from jax.experimental.pallas import tpu as pltpu


def _round_up(x, m):
    return (x + m - 1) // m * m


def _choose_tm(m, cap=256):
    """M tile: multiple of 16 (bf16 sublane-dense), capped. Returns (tm, Mp)."""
    mp = _round_up(max(m, 1), 16)
    if mp <= cap:
        return mp, mp
    return cap, _round_up(m, cap)


# ----------------------------------------------------------------------------
# Pallas kernel:  o = act(x @ w + b)
# Weights are small and grid-invariant -> single VMEM-resident block; the
# grid only tiles the M (row) dimension.
# ----------------------------------------------------------------------------
def _mm_bias_act_kernel(x_ref, w_ref, b_ref, o_ref, *, act):
    y = jnp.dot(x_ref[...], w_ref[...], preferred_element_type=jnp.float32)
    y = y + b_ref[...]                       # (tm, N) + (1, N) broadcast
    if act == "relu":
        y = jnp.maximum(y, 0.0)
    elif act == "sigmoid":
        y = jax.nn.sigmoid(y)
    o_ref[...] = y.astype(o_ref.dtype)


def matmul_bias_act(x, w, b, act, *, tm, out_dtype):
    """y = act(x @ w + b) on pre-padded operands; x:(Mp,Kp) bf16, w:(Kp,Np) bf16."""
    Mp, Kp = x.shape
    Kp2, Np = w.shape
    assert Kp == Kp2 and Mp % tm == 0, (x.shape, w.shape, tm)
    out_isize = jnp.dtype(out_dtype).itemsize
    cost = pl.CostEstimate(
        flops=2 * Mp * Kp * Np,
        transcendentals=(Mp * Np) if act == "sigmoid" else 0,
        bytes_accessed=(x.size * x.dtype.itemsize + w.size * w.dtype.itemsize
                        + b.size * b.dtype.itemsize + Mp * Np * out_isize),
    )
    return pl.pallas_call(
        functools.partial(_mm_bias_act_kernel, act=act),
        out_shape=jax.ShapeDtypeStruct((Mp, Np), out_dtype),
        grid_spec=pltpu.PrefetchScalarGridSpec(
            num_scalar_prefetch=0,
            grid=(Mp // tm,),
            in_specs=[
                pl.BlockSpec((tm, Kp), lambda i: (i, 0)),   # activations
                pl.BlockSpec((Kp, Np), lambda i: (0, 0)),   # weights (VMEM-resident)
                pl.BlockSpec((1, Np), lambda i: (0, 0)),    # bias   (VMEM-resident)
            ],
            out_specs=pl.BlockSpec((tm, Np), lambda i: (i, 0)),
        ),
        compiler_params=pltpu.CompilerParams(
            dimension_semantics=("parallel",),
            vmem_limit_bytes=32 * 1024 * 1024),
        cost_estimate=cost,
    )(x, w, b)


# ----------------------------------------------------------------------------
# Host-side lowering helpers (exact, f32)
# ----------------------------------------------------------------------------
def deconv_to_dense(W, stride, padding, Hin, Win):
    """Dense lowering of ConvTranspose2d (PyTorch semantics).

    Rows (ci,iy,ix) channel-major, cols (co,oy,ox) channel-major.
    Only used to fold fc+deconv1 (3x3 -> 6x6, tiny)."""
    W = np.asarray(W, np.float32)
    Cin, Cout, K, _ = W.shape
    Hout = (Hin - 1) * stride - 2 * padding + K
    Wout = (Win - 1) * stride - 2 * padding + K
    M = np.zeros((Cin, Hin, Win, Cout, Hout, Wout), np.float32)
    iy = np.arange(Hin)
    ix = np.arange(Win)
    for ky in range(K):
        for kx in range(K):
            oy = iy * stride - padding + ky
            ox = ix * stride - padding + kx
            my = (oy >= 0) & (oy < Hout)
            mx = (ox >= 0) & (ox < Wout)
            iy_v, oy_v = iy[my], oy[my]
            ix_v, ox_v = ix[mx], ox[mx]
            if iy_v.size == 0 or ix_v.size == 0:
                continue
            M[:, iy_v[:, None], ix_v[None, :], :,
              oy_v[:, None], ox_v[None, :]] += W[:, :, ky, kx]
    return M.reshape(Cin * Hin * Win, Cout * Hout * Wout), (Cout, Hout, Wout)


def deconv_subpixel_weights(W, bias, padding):
    """Lower ConvTranspose2d(k=4, stride=2) to a shift-gather matmul (f32).

    For channel-last x (B,Hin,Win,Cin) and the gathered tensor
      Xg[n,qy,qx,(jy*nS+jx)*Cin+ci] = x[n, qy+shifts[jy], qx+shifts[jx], ci]
    (zero outside [0,Hin)), the transposed-conv output is
      out[n, 2qy+sy, 2qx+sx, co] = (Xg @ Wg)[n,qy,qx,(sy*2+sx)*Cout+co] + b[co].
    """
    W = np.asarray(W, np.float32)
    bias = np.asarray(bias, np.float32)
    Cin, Cout, K, _ = W.shape
    assert K == 4 and padding in (0, 1)
    shifts = (-1, 0, 1) if padding == 1 else (-1, 0)
    nS = len(shifts)
    Wg = np.zeros((nS, nS, Cin, 2, 2, Cout), np.float32)
    for sy in range(2):
        oy0, ry = divmod(sy + padding, 2)
        for jy, ey in enumerate(shifts):
            dy = oy0 - ey
            if dy not in (0, 1):
                continue
            ky = ry + 2 * dy
            for sx in range(2):
                ox0, rx = divmod(sx + padding, 2)
                for jx, ex in enumerate(shifts):
                    dx = ox0 - ex
                    if dx not in (0, 1):
                        continue
                    kx = rx + 2 * dx
                    Wg[jy, jx, :, sy, sx, :] = W[:, :, ky, kx]
    return Wg.reshape(nS * nS * Cin, 4 * Cout), np.tile(bias, 4)


# ----------------------------------------------------------------------------
# Parameters + one-time prep (small bf16 matrices cached on device)
# ----------------------------------------------------------------------------
def make_params(key, latent_dim, num_classes, output_channels):
    ks = jax.random.split(key, 8)
    d_in = latent_dim + num_classes
    return {
        "W_fc": jax.random.normal(ks[0], (128 * 3 * 3, d_in), jnp.float32) * 0.05,
        "b_fc": jax.random.normal(ks[1], (128 * 3 * 3,), jnp.float32) * 0.01,
        "W1": jax.random.normal(ks[2], (128, 64, 4, 4), jnp.float32) * 0.05,
        "b1": jax.random.normal(ks[3], (64,), jnp.float32) * 0.01,
        "W2": jax.random.normal(ks[4], (64, 32, 4, 4), jnp.float32) * 0.05,
        "b2": jax.random.normal(ks[5], (32,), jnp.float32) * 0.01,
        "W3": jax.random.normal(ks[6], (32, output_channels, 4, 4), jnp.float32) * 0.05,
        "b3": jax.random.normal(ks[7], (output_channels,), jnp.float32) * 0.01,
    }


def prepare_decoder(params):
    """Fold fc+deconv1, lower deconv2/3 to sub-pixel gather-matmul weights,
    pad to lane multiples, cast bf16 once, put on device."""
    # fold fc + deconv1 (no nonlinearity between them) in f32
    A = np.asarray(params["W_fc"], np.float32).T                   # (d_in, 1152)
    b_fc = np.asarray(params["b_fc"], np.float32)
    M1, (C1, H1, W1o) = deconv_to_dense(params["W1"], 2, 1, 3, 3)  # cols (co,oy,ox)
    # re-order deconv1 output columns to channel-last (oy, ox, co)
    M1 = M1.reshape(-1, C1, H1 * W1o).transpose(0, 2, 1).reshape(-1, H1 * W1o * C1)
    W_fold = A @ M1                                                # (d_in, 6*6*64)
    b_fold = b_fc @ M1 + np.tile(np.asarray(params["b1"], np.float32), H1 * W1o)

    # deconv2 / deconv3 -> shift-gather matmul weights
    Wg2, bg2 = deconv_subpixel_weights(params["W2"], params["b2"], padding=0)
    Wg3, bg3 = deconv_subpixel_weights(params["W3"], params["b3"], padding=1)

    def pad_cast(W, b):
        K, N = W.shape
        Kp, Np = _round_up(K, 128), _round_up(N, 128)
        Wp = np.zeros((Kp, Np), np.float32); Wp[:K, :N] = W
        bp = np.zeros((1, Np), np.float32);  bp[0, :N] = b
        return jnp.asarray(Wp, jnp.bfloat16), jnp.asarray(bp, jnp.float32)

    wA, bA = pad_cast(W_fold, b_fold)     # (128, 2304)
    wB, bB = pad_cast(Wg2, bg2)           # (256, 128)
    wC, bC = pad_cast(Wg3, bg3)           # (384, 128)

    weights = {"wA": wA, "bA": bA, "wB": wB, "bB": bB, "wC": wC, "bC": bC}
    meta = {"nA": W_fold.shape[1], "c1": C1,
            "c2": int(np.asarray(params["W2"]).shape[1]),
            "c_out": int(np.asarray(params["W3"]).shape[1])}
    return {"weights": weights, "meta": meta}


# ----------------------------------------------------------------------------
# jitted forward
# ----------------------------------------------------------------------------
def _gather_shifts(x, shifts, q):
    """x: (B,H,W,C) -> (B,q,q,len(shifts)^2*C); zero outside [0,H)."""
    _, H, _, _ = x.shape
    lo = -min(shifts)
    hi = max(q - 1 + max(shifts) - (H - 1), 0)
    xp = jnp.pad(x, ((0, 0), (lo, hi), (lo, hi), (0, 0)))
    parts = []
    for ey in shifts:
        for ex in shifts:
            parts.append(xp[:, lo + ey:lo + ey + q, lo + ex:lo + ex + q, :])
    return jnp.concatenate(parts, axis=-1)


def _pixel_shuffle(y, bn, q, c):
    """y: (bn*q*q, 4*c) rows (n,qy,qx), cols (sy,sx,c) -> (bn, 2q, 2q, c)."""
    y = y.reshape(bn, q, q, 2, 2, c)
    y = y.transpose(0, 1, 3, 2, 4, 5)
    return y.reshape(bn, 2 * q, 2 * q, c)


def _forward_impl(meta, weights, z, labels):
    bn = z.shape[0]
    zc = jnp.concatenate([z, labels], axis=1).astype(jnp.bfloat16)
    d_in = zc.shape[1]

    # layer A: (fc + deconv1) folded, relu -> (B, 6, 6, 64)
    wA, bA = weights["wA"], weights["bA"]
    tm, mp = _choose_tm(bn)
    xA = jnp.zeros((mp, wA.shape[0]), jnp.bfloat16).at[:bn, :d_in].set(zc)
    hA = matmul_bias_act(xA, wA, bA, "relu", tm=tm, out_dtype=jnp.bfloat16)
    h1 = hA[:bn, :meta["nA"]].reshape(bn, 6, 6, meta["c1"])

    # layer B: deconv2 (k=4,s=2,p=0) as shift-gather matmul, relu -> (B,14,14,32)
    wB, bB = weights["wB"], weights["bB"]
    g2 = _gather_shifts(h1, (-1, 0), 7)                   # (B, 7, 7, 4*64)
    m2 = bn * 7 * 7
    tm, mp = _choose_tm(m2)
    x2 = g2.reshape(m2, g2.shape[-1])
    x2 = jnp.pad(x2, ((0, mp - m2), (0, wB.shape[0] - x2.shape[1])))
    h2p = matmul_bias_act(x2, wB, bB, "relu", tm=tm, out_dtype=jnp.bfloat16)
    h2 = _pixel_shuffle(h2p[:m2, :4 * meta["c2"]], bn, 7, meta["c2"])

    # layer C: deconv3 (k=4,s=2,p=1) as shift-gather matmul, sigmoid -> (B,28,28,c)
    wC, bC = weights["wC"], weights["bC"]
    g3 = _gather_shifts(h2, (-1, 0, 1), 14)               # (B, 14, 14, 9*32)
    m3 = bn * 14 * 14
    tm, mp = _choose_tm(m3)
    x3 = g3.reshape(m3, g3.shape[-1])
    x3 = jnp.pad(x3, ((0, mp - m3), (0, wC.shape[0] - x3.shape[1])))
    h3p = matmul_bias_act(x3, wC, bC, "sigmoid", tm=tm, out_dtype=jnp.float32)
    out = _pixel_shuffle(h3p[:m3, :4 * meta["c_out"]], bn, 14, meta["c_out"])
    return out.transpose(0, 3, 1, 2)                      # NCHW


def make_decoder_forward(prep):
    """Returns a jitted forward(weights, z, labels) -> (B, C, 28, 28)."""
    return jax.jit(functools.partial(_forward_impl, prep["meta"]))


# ----------------------------------------------------------------------------
# Pure-JAX f32 reference (PyTorch ConvTranspose2d semantics) for validation
# ----------------------------------------------------------------------------
def _conv_transpose_ref(x, W, b, stride, padding):
    K = W.shape[2]
    rhs = jnp.flip(W, (2, 3)).transpose(1, 0, 2, 3)      # OIHW, flipped
    pad = K - 1 - padding
    y = jax.lax.conv_general_dilated(
        x, rhs, window_strides=(1, 1),
        padding=((pad, pad), (pad, pad)),
        lhs_dilation=(stride, stride),
        dimension_numbers=("NCHW", "OIHW", "NCHW"),
        precision=jax.lax.Precision.HIGHEST)
    return y + b[None, :, None, None]


def reference_forward(z, labels, p):
    zc = jnp.concatenate([z, labels], axis=1)
    h = zc @ jnp.asarray(p["W_fc"]).T + p["b_fc"]
    h = h.reshape(-1, 128, 3, 3)
    h = jax.nn.relu(_conv_transpose_ref(h, p["W1"], p["b1"], 2, 1))
    h = jax.nn.relu(_conv_transpose_ref(h, p["W2"], p["b2"], 2, 0))
    return jax.nn.sigmoid(_conv_transpose_ref(h, p["W3"], p["b3"], 2, 1))


if __name__ == "__main__":
    latent_dim, num_classes, output_channels, B = 16, 10, 1, 2

    key = jax.random.PRNGKey(0)
    k_params, k_z = jax.random.split(key)
    params = make_params(k_params, latent_dim, num_classes, output_channels)

    prep = prepare_decoder(params)          # one-time host prep, cached on device
    fwd = make_decoder_forward(prep)        # jitted forward

    z = jax.random.normal(k_z, (B, latent_dim), jnp.float32)
    labels = jax.nn.one_hot(jnp.array([3, 7]), num_classes, dtype=jnp.float32)

    out = jax.block_until_ready(fwd(prep["weights"], z, labels))
    assert out.shape == (B, output_channels, 28, 28), out.shape

    ref = jax.block_until_ready(reference_forward(z, labels, params))
    # bf16 weights/activations vs f32 reference -> slightly relaxed tolerance
    np.testing.assert_allclose(np.asarray(out), np.asarray(ref),
                               atol=1e-2, rtol=1e-2)

    print("KERNEL_OK")
</pallas_src>

<mosaic_0001>
module attributes {stable_mosaic.version = 11 : i64} {
  func.func @_mm_bias_act_kernel(%arg0: i32, %arg1: memref<16x128xbf16, #tpu.memory_space<vmem>>, %arg2: memref<128x2304xbf16, #tpu.memory_space<vmem>>, %arg3: memref<1x2304xf32, #tpu.memory_space<vmem>>, %arg4: memref<16x2304xbf16, #tpu.memory_space<vmem>>) attributes {dimension_semantics = [#tpu.dimension_semantics<parallel>], iteration_bounds = array<i64: 1>, scalar_prefetch = 0 : i64, scratch_operands = 0 : i64, tpu.core_type = #tpu.core_type<tc>, window_params = [{transform_indices = @transform_0, window_bounds = array<i64: 16, 128>}, {pipeline_mode = #tpu.pipeline_mode<synchronous>, transform_indices = @transform_1, window_bounds = array<i64: 128, 2304>}, {pipeline_mode = #tpu.pipeline_mode<synchronous>, transform_indices = @transform_2, window_bounds = array<i64: 1, 2304>}, {transform_indices = @transform_3, window_bounds = array<i64: 16, 2304>}]} {
    %c0 = arith.constant 0 : index
    %c0_0 = arith.constant 0 : index
    %0 = vector.load %arg1[%c0, %c0_0] : memref<16x128xbf16, #tpu.memory_space<vmem>>, vector<16x128xbf16>
    %c0_1 = arith.constant 0 : index
    %c0_2 = arith.constant 0 : index
    %1 = vector.load %arg2[%c0_1, %c0_2] : memref<128x2304xbf16, #tpu.memory_space<vmem>>, vector<128x2304xbf16>
    %cst = arith.constant dense<0.000000e+00> : vector<16x2304xf32>
    %2 = tpu.matmul %0, %1, %cst {dimension_numbers = #tpu.dot_dimension_numbers<[1], [0], [0], [1], [0, 0, 1, 1], [], []>} : vector<16x128xbf16>, vector<128x2304xbf16>, vector<16x2304xf32> -> vector<16x2304xf32>
    %c0_3 = arith.constant 0 : index
    %c0_4 = arith.constant 0 : index
    %3 = vector.load %arg3[%c0_3, %c0_4] : memref<1x2304xf32, #tpu.memory_space<vmem>>, vector<1x2304xf32>
    %4 = vector.broadcast %3 : vector<1x2304xf32> to vector<16x2304xf32>
    %5 = arith.addf %2, %4 : vector<16x2304xf32>
    %cst_5 = arith.constant 0.000000e+00 : f32
    %6 = vector.broadcast %cst_5 : f32 to vector<16x2304xf32>
    %7 = arith.maximumf %5, %6 : vector<16x2304xf32>
    %8 = arith.truncf %7 : vector<16x2304xf32> to vector<16x2304xbf16>
    %c0_6 = arith.constant 0 : index
    %c0_7 = arith.constant 0 : index
    %9 = vector.load %arg4[%c0_6, %c0_7] : memref<16x2304xbf16, #tpu.memory_space<vmem>>, vector<16x2304xbf16>
    tpu.vector_store %arg4[%c0_6, %c0_7], %8 {strides = array<i32>} : memref<16x2304xbf16, #tpu.memory_space<vmem>>, vector<16x2304xbf16>,
    return
  }
  func.func @transform_0(%arg0: i32) -> (i32, i32) {
    %c0_i32 = arith.constant 0 : i32
    %c0_i32_0 = arith.constant 0 : i32
    return %arg0, %c0_i32 : i32, i32
  }
  func.func @transform_1(%arg0: i32) -> (i32, i32) {
    %c0_i32 = arith.constant 0 : i32
    %c0_i32_0 = arith.constant 0 : i32
    %c0_i32_1 = arith.constant 0 : i32
    return %c0_i32, %c0_i32_0 : i32, i32
  }
  func.func @transform_2(%arg0: i32) -> (i32, i32) {
    %c0_i32 = arith.constant 0 : i32
    %c0_i32_0 = arith.constant 0 : i32
    %c0_i32_1 = arith.constant 0 : i32
    return %c0_i32, %c0_i32_0 : i32, i32
  }
  func.func @transform_3(%arg0: i32) -> (i32, i32) {
    %c0_i32 = arith.constant 0 : i32
    %c0_i32_0 = arith.constant 0 : i32
    return %arg0, %c0_i32 : i32, i32
  }
}

module attributes {stable_mosaic.version = 11 : i64} {
  func.func @_mm_bias_act_kernel(%arg0: i32, %arg1: memref<256x384xbf16, #tpu.memory_space<vmem>>, %arg2: memref<384x128xbf16, #tpu.memory_space<vmem>>, %arg3: memref<1x128xf32, #tpu.memory_space<vmem>>, %arg4: memref<256x128xf32, #tpu.memory_space<vmem>>) attributes {dimension_semantics = [#tpu.dimension_semantics<parallel>], iteration_bounds = array<i64: 2>, scalar_prefetch = 0 : i64, scratch_operands = 0 : i64, tpu.core_type = #tpu.core_type<tc>, window_params = [{transform_indices = @transform_0, window_bounds = array<i64: 256, 384>}, {pipeline_mode = #tpu.pipeline_mode<synchronous>, transform_indices = @transform_1, window_bounds = array<i64: 384, 128>}, {pipeline_mode = #tpu.pipeline_mode<synchronous>, transform_indices = @transform_2, window_bounds = array<i64: 1, 128>}, {transform_indices = @transform_3, window_bounds = array<i64: 256, 128>}]} {
    %c0 = arith.constant 0 : index
    %c0_0 = arith.constant 0 : index
    %0 = vector.load %arg1[%c0, %c0_0] : memref<256x384xbf16, #tpu.memory_space<vmem>>, vector<256x384xbf16>
    %c0_1 = arith.constant 0 : index
    %c0_2 = arith.constant 0 : index
    %1 = vector.load %arg2[%c0_1, %c0_2] : memref<384x128xbf16, #tpu.memory_space<vmem>>, vector<384x128xbf16>
    %cst = arith.constant dense<0.000000e+00> : vector<256x128xf32>
    %2 = tpu.matmul %0, %1, %cst {dimension_numbers = #tpu.dot_dimension_numbers<[1], [0], [0], [1], [0, 0, 1, 1], [], []>} : vector<256x384xbf16>, vector<384x128xbf16>, vector<256x128xf32> -> vector<256x128xf32>
    %c0_3 = arith.constant 0 : index
    %c0_4 = arith.constant 0 : index
    %3 = vector.load %arg3[%c0_3, %c0_4] : memref<1x128xf32, #tpu.memory_space<vmem>>, vector<1x128xf32>
    %4 = vector.broadcast %3 : vector<1x128xf32> to vector<256x128xf32>
    %5 = arith.addf %2, %4 : vector<256x128xf32>
    %6 = arith.negf %5 : vector<256x128xf32>
    %7 = math.exp %6 : vector<256x128xf32>
    %cst_5 = arith.constant 1.000000e+00 : f32
    %8 = vector.broadcast %cst_5 : f32 to vector<256x128xf32>
    %9 = arith.addf %8, %7 : vector<256x128xf32>
    %10 = arith.divf %8, %9 : vector<256x128xf32>
    %c0_6 = arith.constant 0 : index
    %c0_7 = arith.constant 0 : index
    %11 = vector.load %arg4[%c0_6, %c0_7] : memref<256x128xf32, #tpu.memory_space<vmem>>, vector<256x128xf32>
    tpu.vector_store %arg4[%c0_6, %c0_7], %10 {strides = array<i32>} : memref<256x128xf32, #tpu.memory_space<vmem>>, vector<256x128xf32>,
    return
  }
  func.func @transform_0(%arg0: i32) -> (i32, i32) {
    %c0_i32 = arith.constant 0 : i32
    %c0_i32_0 = arith.constant 0 : i32
    return %arg0, %c0_i32 : i32, i32
  }
  func.func @transform_1(%arg0: i32) -> (i32, i32) {
    %c0_i32 = arith.constant 0 : i32
    %c0_i32_0 = arith.constant 0 : i32
    %c0_i32_1 = arith.constant 0 : i32
    return %c0_i32, %c0_i32_0 : i32, i32
  }
  func.func @transform_2(%arg0: i32) -> (i32, i32) {
    %c0_i32 = arith.constant 0 : i32
    %c0_i32_0 = arith.constant 0 : i32
    %c0_i32_1 = arith.constant 0 : i32
    return %c0_i32, %c0_i32_0 : i32, i32
  }
  func.func @transform_3(%arg0: i32) -> (i32, i32) {
    %c0_i32 = arith.constant 0 : i32
    %c0_i32_0 = arith.constant 0 : i32
    return %arg0, %c0_i32 : i32, i32
  }
}

module attributes {stable_mosaic.version = 11 : i64} {
  func.func @_mm_bias_act_kernel(%arg0: i32, %arg1: memref<112x256xbf16, #tpu.memory_space<vmem>>, %arg2: memref<256x128xbf16, #tpu.memory_space<vmem>>, %arg3: memref<1x128xf32, #tpu.memory_space<vmem>>, %arg4: memref<112x128xbf16, #tpu.memory_space<vmem>>) attributes {dimension_semantics = [#tpu.dimension_semantics<parallel>], iteration_bounds = array<i64: 1>, scalar_prefetch = 0 : i64, scratch_operands = 0 : i64, tpu.core_type = #tpu.core_type<tc>, window_params = [{transform_indices = @transform_0, window_bounds = array<i64: 112, 256>}, {pipeline_mode = #tpu.pipeline_mode<synchronous>, transform_indices = @transform_1, window_bounds = array<i64: 256, 128>}, {pipeline_mode = #tpu.pipeline_mode<synchronous>, transform_indices = @transform_2, window_bounds = array<i64: 1, 128>}, {transform_indices = @transform_3, window_bounds = array<i64: 112, 128>}]} {
    %c0 = arith.constant 0 : index
    %c0_0 = arith.constant 0 : index
    %0 = vector.load %arg1[%c0, %c0_0] : memref<112x256xbf16, #tpu.memory_space<vmem>>, vector<112x256xbf16>
    %c0_1 = arith.constant 0 : index
    %c0_2 = arith.constant 0 : index
    %1 = vector.load %arg2[%c0_1, %c0_2] : memref<256x128xbf16, #tpu.memory_space<vmem>>, vector<256x128xbf16>
    %cst = arith.constant dense<0.000000e+00> : vector<112x128xf32>
    %2 = tpu.matmul %0, %1, %cst {dimension_numbers = #tpu.dot_dimension_numbers<[1], [0], [0], [1], [0, 0, 1, 1], [], []>} : vector<112x256xbf16>, vector<256x128xbf16>, vector<112x128xf32> -> vector<112x128xf32>
    %c0_3 = arith.constant 0 : index
    %c0_4 = arith.constant 0 : index
    %3 = vector.load %arg3[%c0_3, %c0_4] : memref<1x128xf32, #tpu.memory_space<vmem>>, vector<1x128xf32>
    %4 = vector.broadcast %3 : vector<1x128xf32> to vector<112x128xf32>
    %5 = arith.addf %2, %4 : vector<112x128xf32>
    %cst_5 = arith.constant 0.000000e+00 : f32
    %6 = vector.broadcast %cst_5 : f32 to vector<112x128xf32>
    %7 = arith.maximumf %5, %6 : vector<112x128xf32>
    %8 = arith.truncf %7 : vector<112x128xf32> to vector<112x128xbf16>
    %c0_6 = arith.constant 0 : index
    %c0_7 = arith.constant 0 : index
    %9 = vector.load %arg4[%c0_6, %c0_7] : memref<112x128xbf16, #tpu.memory_space<vmem>>, vector<112x128xbf16>
    tpu.vector_store %arg4[%c0_6, %c0_7], %8 {strides = array<i32>} : memref<112x128xbf16, #tpu.memory_space<vmem>>, vector<112x128xbf16>,
    return
  }
  func.func @transform_0(%arg0: i32) -> (i32, i32) {
    %c0_i32 = arith.constant 0 : i32
    %c0_i32_0 = arith.constant 0 : i32
    return %arg0, %c0_i32 : i32, i32
  }
  func.func @transform_1(%arg0: i32) -> (i32, i32) {
    %c0_i32 = arith.constant 0 : i32
    %c0_i32_0 = arith.constant 0 : i32
    %c0_i32_1 = arith.constant 0 : i32
    return %c0_i32, %c0_i32_0 : i32, i32
  }
  func.func @transform_2(%arg0: i32) -> (i32, i32) {
    %c0_i32 = arith.constant 0 : i32
    %c0_i32_0 = arith.constant 0 : i32
    %c0_i32_1 = arith.constant 0 : i32
    return %c0_i32, %c0_i32_0 : i32, i32
  }
  func.func @transform_3(%arg0: i32) -> (i32, i32) {
    %c0_i32 = arith.constant 0 : i32
    %c0_i32_0 = arith.constant 0 : i32
    return %arg0, %c0_i32 : i32, i32
  }
}

</mosaic_0001>

<llo_original>
// kernel: _forward_impl.4
$region0: #{_forward_impl.4}
  #allocation0 [shape = 'u32[]', space=smem, size = 0x4, offset = 0x4, fixed_abs, tag = 'smem constant byte address 0x4 - core index']
  #allocation1 [shape = 'u32[72,128]{1,0:T(1,128)}', space=vmem, size = 0x9000, scoped, tag = 'internal scratch']
  %s0 = inlined_call_operand.vmem [shape: bf16[112,256], index: 0, kind: input, shape index: {}]
  %s1 = inlined_call_operand.vmem [shape: bf16[256,128], index: 1, kind: input, shape index: {}]
  %s2 = inlined_call_operand.vmem [shape: f32[1,128], index: 2, kind: input, shape index: {}]
  %s3 = inlined_call_operand.vmem [shape: bf16[112,128], index: 3, kind: output, shape index: {}]
  %s4 = sld [smem:[#allocation0]]
  $region22: #{_forward_impl.4} parent=0
    _
  %s6 = ssub.s32 1, %s4
  %s7 = scalar_select 0, %s6, %s4
  // Predicated region
  $region2: #{_forward_impl.4} parent=0 // pred_check
    _
  $region3: #{_forward_impl.4} parent=0 // pred_check_branch
    %9 = sbr.rel (0) target = $region5
  $region4: #{_forward_impl.4} parent=0 // pred_region
    _
  $region5: #{_forward_impl.4} parent=0 // pred_fallthru
    _
  // Predicated region
  $region6: #{_forward_impl.4} parent=0 // pred_check
    _
  $region7: #{_forward_impl.4} parent=0 // pred_check_branch
    %11 = sbr.rel (0) target = $region9
  $region8: #{_forward_impl.4} parent=0 // pred_region
    _
  $region9: #{_forward_impl.4} parent=0 // pred_fallthru
    _
  // Predicated region
  $region10: #{_forward_impl.4} parent=0 // pred_check
    _
  $region11: #{_forward_impl.4} parent=0 // pred_check_branch
    %13 = sbr.rel (0) target = $region13
  $region12: #{_forward_impl.4} parent=0 // pred_region
    _
  $region13: #{_forward_impl.4} parent=0 // pred_fallthru
    _
  %v14 = vld [vmem:[%s0] sm:$0xff]
  %v15 = vld [vmem:[%s0 + $0x8] sm:$0xff]
  %v16 = vld [vmem:[%s0 + $0x10] sm:$0xff]
  %v17 = vld [vmem:[%s0 + $0x18] sm:$0xff]
  %v18 = vld [vmem:[%s0 + $0x20] sm:$0xff]
  %v19 = vld [vmem:[%s0 + $0x28] sm:$0xff]
  %v20 = vld [vmem:[%s0 + $0x30] sm:$0xff]
  %v21 = vld [vmem:[%s0 + $0x38] sm:$0xff]
  %v22 = vld [vmem:[%s0 + $0x40] sm:$0xff]
  %v23 = vld [vmem:[%s0 + $0x48] sm:$0xff]
  %v24 = vld [vmem:[%s0 + $0x50] sm:$0xff]
  %v25 = vld [vmem:[%s0 + $0x58] sm:$0xff]
  %v26 = vld [vmem:[%s0 + $0x60] sm:$0xff]
  %v27 = vld [vmem:[%s0 + $0x68] sm:$0xff]
  %v28 = vld [vmem:[%s1] sm:$0xf]
  %v29 = vld [vmem:[%s1 + $0x4] sm:$0xf]
  %v30 = vld [vmem:[%s1 + $0x8] sm:$0xf]
  %v31 = vld [vmem:[%s1 + $0xc] sm:$0xf]
  %v32 = vld [vmem:[%s1 + $0x10] sm:$0xf]
  %v33 = vld [vmem:[%s1 + $0x14] sm:$0xf]
  %v34 = vld [vmem:[%s1 + $0x18] sm:$0xf]
  %v35 = vld [vmem:[%s1 + $0x1c] sm:$0xf]
  %v36 = vld [vmem:[%s1 + $0x20] sm:$0xf]
  %v37 = vld [vmem:[%s1 + $0x24] sm:$0xf]
  %v38 = vld [vmem:[%s1 + $0x28] sm:$0xf]
  %v39 = vld [vmem:[%s1 + $0x2c] sm:$0xf]
  %v40 = vld [vmem:[%s1 + $0x30] sm:$0xf]
  %v41 = vld [vmem:[%s1 + $0x34] sm:$0xf]
  %v42 = vld [vmem:[%s1 + $0x38] sm:$0xf]
  %v43 = vld [vmem:[%s1 + $0x3c] sm:$0xf]
  %v44 = vld [vmem:[%s1 + $0x40] sm:$0xf]
  %v45 = vld [vmem:[%s1 + $0x44] sm:$0xf]
  %v46 = vld [vmem:[%s1 + $0x48] sm:$0xf]
  %v47 = vld [vmem:[%s1 + $0x4c] sm:$0xf]
  %v48 = vld [vmem:[%s1 + $0x50] sm:$0xf]
  %v49 = vld [vmem:[%s1 + $0x54] sm:$0xf]
  %v50 = vld [vmem:[%s1 + $0x58] sm:$0xf]
  %v51 = vld [vmem:[%s1 + $0x5c] sm:$0xf]
  %v52 = vld [vmem:[%s1 + $0x60] sm:$0xf]
  %v53 = vld [vmem:[%s1 + $0x64] sm:$0xf]
  %v54 = vld [vmem:[%s1 + $0x68] sm:$0xf]
  %v55 = vld [vmem:[%s1 + $0x6c] sm:$0xf]
  %v56 = vld [vmem:[%s1 + $0x70] sm:$0xf]
  %v57 = vld [vmem:[%s1 + $0x74] sm:$0xf]
  %v58 = vld [vmem:[%s1 + $0x78] sm:$0xf]
  %v59 = vld [vmem:[%s1 + $0x7c] sm:$0xf]
  %v60 = vld [vmem:[%s2] sm:$0x1]
  %v62 = vperm.slane %v60, 0
  %v78 = vunpack.c.l.b16 %v14
  %v79 = vunpack.c.h.b16 %v14
  %v80 = vunpack.c.l.b16 %v15
  %v81 = vunpack.c.h.b16 %v15
  %v82 = vunpack.c.l.b16 %v16
  %v83 = vunpack.c.h.b16 %v16
  %v84 = vunpack.c.l.b16 %v17
  %v85 = vunpack.c.h.b16 %v17
  %v86 = vunpack.c.l.b16 %v18
  %v87 = vunpack.c.h.b16 %v18
  %v88 = vunpack.c.l.b16 %v19
  %v89 = vunpack.c.h.b16 %v19
  %v90 = vunpack.c.l.b16 %v20
  %v91 = vunpack.c.h.b16 %v20
  %v92 = vunpack.c.l.b16 %v21
  %v93 = vunpack.c.h.b16 %v21
  %v94 = vunpack.c.l.b16 %v22
  %v95 = vunpack.c.h.b16 %v22
  %v96 = vunpack.c.l.b16 %v23
  %v97 = vunpack.c.h.b16 %v23
  %v98 = vunpack.c.l.b16 %v24
  %v99 = vunpack.c.h.b16 %v24
  %v100 = vunpack.c.l.b16 %v25
  %v101 = vunpack.c.h.b16 %v25
  %v102 = vunpack.c.l.b16 %v26
  %v103 = vunpack.c.h.b16 %v26
  %v104 = vunpack.c.l.b16 %v27
  %v105 = vunpack.c.h.b16 %v27
  %v106 = vpack.c.b16 %v80, %v78
  %v107 = vpack.c.b16 %v81, %v79
  %v108 = vpack.c.b16 %v84, %v82
  %v109 = vpack.c.b16 %v85, %v83
  %v110 = vpack.c.b16 %v88, %v86
  %v111 = vpack.c.b16 %v89, %v87
  %v112 = vpack.c.b16 %v92, %v90
  %v113 = vpack.c.b16 %v93, %v91
  %v114 = vpack.c.b16 %v96, %v94
  %v115 = vpack.c.b16 %v97, %v95
  %v116 = vpack.c.b16 %v100, %v98
  %v117 = vpack.c.b16 %v101, %v99
  %v118 = vpack.c.b16 %v104, %v102
  %v119 = vpack.c.b16 %v105, %v103
  %v166 = vunpack.c.l.b16 %v28
  %v167 = vunpack.c.l.b16 %v29
  %v168 = vunpack.c.l.b16 %v30
  %v169 = vunpack.c.l.b16 %v31
  %v170 = vunpack.c.l.b16 %v32
  %v171 = vunpack.c.l.b16 %v33
  %v172 = vunpack.c.l.b16 %v34
  %v173 = vunpack.c.l.b16 %v35
  %v174 = vunpack.c.l.b16 %v36
  %v175 = vunpack.c.l.b16 %v37
  %v176 = vunpack.c.l.b16 %v38
  %v177 = vunpack.c.l.b16 %v39
  %v178 = vunpack.c.l.b16 %v40
  %v179 = vunpack.c.l.b16 %v41
  %v180 = vunpack.c.l.b16 %v42
  %v181 = vunpack.c.l.b16 %v43
  %v182 = vunpack.c.l.b16 %v44
  %v183 = vunpack.c.l.b16 %v45
  %v184 = vunpack.c.l.b16 %v46
  %v185 = vunpack.c.l.b16 %v47
  %v186 = vunpack.c.l.b16 %v48
  %v187 = vunpack.c.l.b16 %v49
  %v188 = vunpack.c.l.b16 %v50
  %v189 = vunpack.c.l.b16 %v51
  %v190 = vunpack.c.l.b16 %v52
  %v191 = vunpack.c.l.b16 %v53
  %v192 = vunpack.c.l.b16 %v54
  %v193 = vunpack.c.l.b16 %v55
  %v194 = vunpack.c.l.b16 %v56
  %v195 = vunpack.c.l.b16 %v57
  %v196 = vunpack.c.l.b16 %v58
  %v197 = vunpack.c.l.b16 %v59
  %v198 = vpack.c.b16 %v167, %v166
  %v199 = vpack.c.b16 %v169, %v168
  %v200 = vpack.c.b16 %v171, %v170
  %v201 = vpack.c.b16 %v173, %v172
  %v202 = vpack.c.b16 %v175, %v174
  %v203 = vpack.c.b16 %v177, %v176
  %v204 = vpack.c.b16 %v179, %v178
  %v205 = vpack.c.b16 %v181, %v180
  %v206 = vpack.c.b16 %v183, %v182
  %v207 = vpack.c.b16 %v185, %v184
  %v208 = vpack.c.b16 %v187, %v186
  %v209 = vpack.c.b16 %v189, %v188
  %v210 = vpack.c.b16 %v191, %v190
  %v211 = vpack.c.b16 %v193, %v192
  %v212 = vpack.c.b16 %v195, %v194
  %v213 = vpack.c.b16 %v197, %v196
  %230 = vmatpush.bf16.msra.mxu0 %v205
  %231 = vmatpush.bf16.msra.mxu0 %v204
  %232 = vmatpush.bf16.msra.mxu0 %v203
  %233 = vmatpush.bf16.msra.mxu0 %v202
  %234 = vmatpush.bf16.msra.mxu0 %v201
  %235 = vmatpush.bf16.msra.mxu0 %v200
  %236 = vmatpush.bf16.msra.mxu0 %v199
  %237 = vmatpush.bf16.msra.mxu0 %v198
  %238 = vmatmul.bf16.gmra.mxu0 %v106
  %v239 = vpop.f32.mrf.mxu0
  %v240 = vadd.f32 %v62, %v239
  %v241 = vpop.f32.mrf.mxu0
  %v242 = vadd.f32 %v62, %v241
  %243 = vmatmul.bf16.gmra.mxu0 %v108
  %v244 = vpop.f32.mrf.mxu0
  %v245 = vadd.f32 %v62, %v244
  %v246 = vpop.f32.mrf.mxu0
  %v247 = vadd.f32 %v62, %v246
  %248 = vmatmul.bf16.gmra.mxu0 %v110
  %v249 = vpop.f32.mrf.mxu0
  %v250 = vadd.f32 %v62, %v249
  %v251 = vpop.f32.mrf.mxu0
  %v252 = vadd.f32 %v62, %v251
  %253 = vmatmul.bf16.gmra.mxu0 %v112
  %v254 = vpop.f32.mrf.mxu0
  %v255 = vadd.f32 %v62, %v254
  %v256 = vpop.f32.mrf.mxu0
  %v257 = vadd.f32 %v62, %v256
  %258 = vmatmul.bf16.gmra.mxu0 %v114
  %v259 = vpop.f32.mrf.mxu0
  %v260 = vadd.f32 %v62, %v259
  %v261 = vpop.f32.mrf.mxu0
  %v262 = vadd.f32 %v62, %v261
  %263 = vmatmul.bf16.gmra.mxu0 %v116
  %v264 = vpop.f32.mrf.mxu0
  %v265 = vadd.f32 %v62, %v264
  %v266 = vpop.f32.mrf.mxu0
  %v267 = vadd.f32 %v62, %v266
  %268 = vmatmul.bf16.gmra.mxu0 %v118
  %v269 = vpop.f32.mrf.mxu0
  %v270 = vadd.f32 %v62, %v269
  %v271 = vpop.f32.mrf.mxu0
  %v272 = vadd.f32 %v62, %v271
  %273 = vdwg.mxu0
  %274 = vmatpush.bf16.msra.mxu0 %v213
  %275 = vmatpush.bf16.msra.mxu0 %v212
  %276 = vmatpush.bf16.msra.mxu0 %v211
  %277 = vmatpush.bf16.msra.mxu0 %v210
  %278 = vmatpush.bf16.msra.mxu0 %v209
  %279 = vmatpush.bf16.msra.mxu0 %v208
  %280 = vmatpush.bf16.msra.mxu0 %v207
  %281 = vmatpush.bf16.msra.mxu0 %v206
  %282 = vmatmul.bf16.gmra.mxu0 %v107
  %v283 = vpop.f32.mrf.mxu0
  %v284 = vadd.f32 %v240, %v283
  %v285 = vpop.f32.mrf.mxu0
  %v286 = vadd.f32 %v242, %v285
  %287 = vmatmul.bf16.gmra.mxu0 %v109
  %v288 = vpop.f32.mrf.mxu0
  %v289 = vadd.f32 %v245, %v288
  %v290 = vpop.f32.mrf.mxu0
  %v291 = vadd.f32 %v247, %v290
  %292 = vmatmul.bf16.gmra.mxu0 %v111
  %v293 = vpop.f32.mrf.mxu0
  %v294 = vadd.f32 %v250, %v293
  %v295 = vpop.f32.mrf.mxu0
  %v296 = vadd.f32 %v252, %v295
  %297 = vmatmul.bf16.gmra.mxu0 %v113
  %v298 = vpop.f32.mrf.mxu0
  %v299 = vadd.f32 %v255, %v298
  %v300 = vpop.f32.mrf.mxu0
  %v301 = vadd.f32 %v257, %v300
  %302 = vmatmul.bf16.gmra.mxu0 %v115
  %v303 = vpop.f32.mrf.mxu0
  %v304 = vadd.f32 %v260, %v303
  %v305 = vpop.f32.mrf.mxu0
  %v306 = vadd.f32 %v262, %v305
  %307 = vmatmul.bf16.gmra.mxu0 %v117
  %v308 = vpop.f32.mrf.mxu0
  %v309 = vadd.f32 %v265, %v308
  %v310 = vpop.f32.mrf.mxu0
  %v311 = vadd.f32 %v267, %v310
  %312 = vmatmul.bf16.gmra.mxu0 %v119
  %v313 = vpop.f32.mrf.mxu0
  %v314 = vadd.f32 %v270, %v313
  %v315 = vpop.f32.mrf.mxu0
  %v316 = vadd.f32 %v272, %v315
  %317 = vdwg.mxu0
  %v318 = vmax.f32 %v284, 0.0
  %v319 = vmax.f32 %v286, 0.0
  %v320 = vmax.f32 %v289, 0.0
  %v321 = vmax.f32 %v291, 0.0
  %v322 = vmax.f32 %v294, 0.0
  %v323 = vmax.f32 %v296, 0.0
  %v324 = vmax.f32 %v299, 0.0
  %v325 = vmax.f32 %v301, 0.0
  %v326 = vmax.f32 %v304, 0.0
  %v327 = vmax.f32 %v306, 0.0
  %v328 = vmax.f32 %v309, 0.0
  %v329 = vmax.f32 %v311, 0.0
  %v330 = vmax.f32 %v314, 0.0
  %v331 = vmax.f32 %v316, 0.0
  %v332 = vpack.c.bf16 %v318, %v318
  %v333 = vpack.c.bf16 %v319, %v319
  %v334 = vpack.c.bf16 %v320, %v320
  %v335 = vpack.c.bf16 %v321, %v321
  %v336 = vpack.c.bf16 %v322, %v322
  %v337 = vpack.c.bf16 %v323, %v323
  %v338 = vpack.c.bf16 %v324, %v324
  %v339 = vpack.c.bf16 %v325, %v325
  %v340 = vpack.c.bf16 %v326, %v326
  %v341 = vpack.c.bf16 %v327, %v327
  %v342 = vpack.c.bf16 %v328, %v328
  %v343 = vpack.c.bf16 %v329, %v329
  %v344 = vpack.c.bf16 %v330, %v330
  %v345 = vpack.c.bf16 %v331, %v331
  %346 = vst [vmem:[%s3] sm:$0xf] %v332
  %347 = vst [vmem:[%s3 + $0x4] sm:$0xf] %v333
  %348 = vst [vmem:[%s3 + $0x8] sm:$0xf] %v334
  %349 = vst [vmem:[%s3 + $0xc] sm:$0xf] %v335
  %350 = vst [vmem:[%s3 + $0x10] sm:$0xf] %v336
  %351 = vst [vmem:[%s3 + $0x14] sm:$0xf] %v337
  %352 = vst [vmem:[%s3 + $0x18] sm:$0xf] %v338
  %353 = vst [vmem:[%s3 + $0x1c] sm:$0xf] %v339
  %354 = vst [vmem:[%s3 + $0x20] sm:$0xf] %v340
  %355 = vst [vmem:[%s3 + $0x24] sm:$0xf] %v341
  %356 = vst [vmem:[%s3 + $0x28] sm:$0xf] %v342
  %357 = vst [vmem:[%s3 + $0x2c] sm:$0xf] %v343
  %358 = vst [vmem:[%s3 + $0x30] sm:$0xf] %v344
  %359 = vst [vmem:[%s3 + $0x34] sm:$0xf] %v345
  // Predicated region
  $region14: #{_forward_impl.4} parent=0 // pred_check
    _
  $region15: #{_forward_impl.4} parent=0 // pred_check_branch
    %361 = sbr.rel (0) target = $region17
  $region16: #{_forward_impl.4} parent=0 // pred_region
    _
  $region17: #{_forward_impl.4} parent=0 // pred_fallthru
    _
  // Predicated region
  $region18: #{_forward_impl.4} parent=0 // pred_check
    _
  $region19: #{_forward_impl.4} parent=0 // pred_check_branch
    %363 = sbr.rel (0) target = $region21
  $region20: #{_forward_impl.4} parent=0 // pred_region
    _
  $region21: #{_forward_impl.4} parent=0 // pred_fallthru
    _

// kernel: _forward_impl.5
$region0: #{_forward_impl.5}
  #allocation0 [shape = 'u32[]', space=smem, size = 0x4, offset = 0x4, fixed_abs, tag = 'smem constant byte address 0x4 - core index']
  #allocation1 [shape = 'u32[72,128]{1,0:T(1,128)}', space=vmem, size = 0x9000, scoped, tag = 'internal scratch']
  %s0 = inlined_call_operand.vmem [shape: bf16[512,384], index: 0, kind: input, shape index: {}]
  %s1 = inlined_call_operand.vmem [shape: bf16[384,128], index: 1, kind: input, shape index: {}]
  %s2 = inlined_call_operand.vmem [shape: f32[1,128], index: 2, kind: input, shape index: {}]
  %s3 = inlined_call_operand.vmem [shape: f32[512,128], index: 3, kind: output, shape index: {}]
  %s4 = sld [smem:[#allocation0]]
  $region45: #{_forward_impl.5} parent=0
    _
  %s6 = ssub.s32 1, %s4
  %s7 = scalar_select 0, %s6, %s4
  loop: start=0, step=1, limit=4
  $region2: #{_forward_impl.5} parent=0 // loop_pre_header
    _
  $region3: #{_forward_impl.5} parent=0 // loop_header
    %s9 = sphi 0, %s13
    %p10 = scmp.ge.s32.totalorder %s9, 4
    %s19 = sphi 0, %s21
    %s22 = sphi 0, %s19
    %s23 = sphi 0, %s22
    %s39 = sphi 0, %s23
    %s43 = sphi 0, %s43
    %s45 = sphi 0, %s43
    %s46 = sphi 0, %s45
    %s60 = sphi 0, %s46
    %s64 = sphi 0, %s64
    %s66 = sphi 0, %s64
    %s67 = sphi 0, %s66
    %s81 = sphi 0, %s67
    %s87 = sphi 0, %s89
    %s90 = sphi 0, %s87
    %s91 = sphi 0, %s90
    %s107 = sphi 0, %s91
  $region4: #{_forward_impl.5} parent=0 // loop_header_branch
    %12 = sbr.rel (%p10) target = $region8
  $region5: #{_forward_impl.5} parent=0 // loop_body
    %s14 = ssub.s32 %s9, 1
    %s15 = ssub.s32 %s9, 2
    %s16 = sadd.s32 %s9, 1
    %s17 = ssub.s32 %s9, %s16
    %p18 = scmp.eq.s32.totalorder %s17, 0
    %s20 = sadd.s32 %s19, 1
    %s21 = scalar_select %p18, %s19, %s20
    %p24 = pneg %p18
    %p25 = scmp.eq.s32.totalorder %s9, 1
    %p26 = por %p24, %p25
    %p27 = scmp.ne.s32.totalorder %s19, %s22
    %p28 = scmp.eq.s32.totalorder %s9, 0
    %p29 = por %p27, %p28
    %p30 = scmp.ne.s32.totalorder %s19, %s22
    %p31 = scmp.eq.s32.totalorder %s14, 1
    %p32 = por %p30, %p31
    %p33 = scmp.ne.s32.totalorder %s22, %s23
    %p34 = scmp.eq.s32.totalorder %s14, 0
    %p35 = por %p33, %p34
    %p36 = scmp.ne.s32.totalorder %s22, %s23
    %p37 = scmp.eq.s32.totalorder %s15, 1
    %p38 = por %p36, %p37
    %p40 = scmp.ne.s32.totalorder %s23, %s39
    %p41 = scmp.eq.s32.totalorder %s15, 0
    %p42 = por %p40, %p41
    %s44 = sadd.s32 %s43, 1
    %p47 = scmp.eq.s32.totalorder %s9, 1
    %p48 = scmp.ne.s32.totalorder %s43, %s45
    %p49 = scmp.eq.s32.totalorder %s9, 0
    %p50 = por %p48, %p49
    %p51 = scmp.ne.s32.totalorder %s43, %s45
    %p52 = scmp.eq.s32.totalorder %s14, 1
    %p53 = por %p51, %p52
    %p54 = scmp.ne.s32.totalorder %s45, %s46
    %p55 = scmp.eq.s32.totalorder %s14, 0
    %p56 = por %p54, %p55
    %p57 = scmp.ne.s32.totalorder %s45, %s46
    %p58 = scmp.eq.s32.totalorder %s15, 1
    %p59 = por %p57, %p58
    %p61 = scmp.ne.s32.totalorder %s46, %s60
    %p62 = scmp.eq.s32.totalorder %s15, 0
    %p63 = por %p61, %p62
    %s65 = sadd.s32 %s64, 1
    %p68 = scmp.eq.s32.totalorder %s9, 1
    %p69 = scmp.ne.s32.totalorder %s64, %s66
    %p70 = scmp.eq.s32.totalorder %s9, 0
    %p71 = por %p69, %p70
    %p72 = scmp.ne.s32.totalorder %s64, %s66
    %p73 = scmp.eq.s32.totalorder %s14, 1
    %p74 = por %p72, %p73
    %p75 = scmp.ne.s32.totalorder %s66, %s67
    %p76 = scmp.eq.s32.totalorder %s14, 0
    %p77 = por %p75, %p76
    %p78 = scmp.ne.s32.totalorder %s66, %s67
    %p79 = scmp.eq.s32.totalorder %s15, 1
    %p80 = por %p78, %p79
    %p82 = scmp.ne.s32.totalorder %s67, %s81
    %p83 = scmp.eq.s32.totalorder %s15, 0
    %p84 = por %p82, %p83
    %s85 = ssub.s32 %s9, %s16
    %p86 = scmp.eq.s32.totalorder %s85, 0
    %s88 = sadd.s32 %s87, 1
    %s89 = scalar_select %p86, %s87, %s88
    %p92 = pneg %p86
    %p93 = scmp.eq.s32.totalorder %s9, 1
    %p94 = por %p92, %p93
    %p95 = scmp.ne.s32.totalorder %s87, %s90
    %p96 = scmp.eq.s32.totalorder %s9, 0
    %p97 = por %p95, %p96
    %p98 = scmp.ne.s32.totalorder %s87, %s90
    %p99 = scmp.eq.s32.totalorder %s14, 1
    %p100 = por %p98, %p99
    %p101 = scmp.ne.s32.totalorder %s90, %s91
    %p102 = scmp.eq.s32.totalorder %s14, 0
    %p103 = por %p101, %p102
    %p104 = scmp.ne.s32.totalorder %s90, %s91
    %p105 = scmp.eq.s32.totalorder %s15, 1
    %p106 = por %p104, %p105
    %p108 = scmp.ne.s32.totalorder %s91, %s107
    %p109 = scmp.eq.s32.totalorder %s15, 0
    %p110 = por %p108, %p109
    %p111 = scmp.le.s32.totalorder 1, %s9
    %p112 = scmp.lt.s32.totalorder %s9, 3
    %p113 = pnand %p111, %p112
    %p114 = pneg %p113
    // Predicated region
    $region9: #{_forward_impl.5} parent=5 // pred_check
      _
    $region10: #{_forward_impl.5} parent=5 // pred_check_branch
      %116 = sbr.rel (%p113) target = $region12
    $region11: #{_forward_impl.5} parent=5 // pred_region
      %s117 = ssub.s32 %s9, 1
      // Predicated region
      $region13: #{_forward_impl.5} parent=11 // pred_check
        %p118 = pneg %p56
      $region14: #{_forward_impl.5} parent=11 // pred_check_branch
        %120 = sbr.rel (%p118) target = $region16
      $region15: #{_forward_impl.5} parent=11 // pred_region
        _
      $region16: #{_forward_impl.5} parent=11 // pred_fallthru
        _
      // Predicated region
      $region17: #{_forward_impl.5} parent=11 // pred_check
        %p121 = pneg %p77
      $region18: #{_forward_impl.5} parent=11 // pred_check_branch
        %123 = sbr.rel (%p121) target = $region20
      $region19: #{_forward_impl.5} parent=11 // pred_region
        _
      $region20: #{_forward_impl.5} parent=11 // pred_fallthru
        _
    $region12: #{_forward_impl.5} parent=5 // pred_fallthru
      _
    %p124 = scmp.lt.s32.totalorder %s9, 2
    // Predicated region
    $region21: #{_forward_impl.5} parent=5 // pred_check
      %p125 = pneg %p124
    $region22: #{_forward_impl.5} parent=5 // pred_check_branch
      %127 = sbr.rel (%p125) target = $region24
    $region23: #{_forward_impl.5} parent=5 // pred_region
      // Predicated region
      $region25: #{_forward_impl.5} parent=23 // pred_check
        %p128 = pneg %p29
      $region26: #{_forward_impl.5} parent=23 // pred_check_branch
        %130 = sbr.rel (%p128) target = $region28
      $region27: #{_forward_impl.5} parent=23 // pred_region
        %s131 = smul.u32 32, %s9
        %p132 = scmp.lt.s32.totalorder %s131, 63
        %s133 = scalar_select %p132, %s131, 63
        %s134 = smul.addr %s133, 3
        %s135 = smul.addr %s134, 4
        %s136 = scalar_lea.vmem %s0, %s135
        %s137 = smul.u32 32, %s9
      $region28: #{_forward_impl.5} parent=23 // pred_fallthru
        _
    $region24: #{_forward_impl.5} parent=5 // pred_fallthru
      _
    %p138 = scmp.le.s32.totalorder 1, %s9
    %p139 = scmp.lt.s32.totalorder %s9, 3
    %p140 = pnand %p138, %p139
    %p141 = pneg %p140
    // Predicated region
    $region29: #{_forward_impl.5} parent=5 // pred_check
      _
    $region30: #{_forward_impl.5} parent=5 // pred_check_branch
      %143 = sbr.rel (%p140) target = $region32
    $region31: #{_forward_impl.5} parent=5 // pred_region
      %s144 = ssub.s32 %s9, 1
      %s145 = smul.u32 32, %s14
      %p146 = scmp.lt.s32.totalorder %s145, 63
      %s147 = scalar_select %p146, %s145, 63
      %s148 = smul.addr %s147, 3
      %s149 = smul.addr %s148, 4
      %s150 = scalar_lea.vmem %s0, %s149
      %p151 = pneg %p35
      %p152 = pneg %p32
      %p153 = pneg %p56
      %p154 = pneg %p53
      %p155 = pneg %p77
      %p156 = pneg %p74
      %p157 = pneg %p103
      %p158 = pneg %p100
      %s159 = smul.u32 32, %s14
      %p160 = scmp.lt.s32.totalorder %s159, 63
      %s161 = scalar_select %p160, %s159, 63
      %s162 = smul.addr %s161, 8
      %s163 = scalar_lea.vmem %s3, %s162
      %s164 = smul.u32 32, %s14
      %p165 = scmp.lt.s32.totalorder %s164, 63
      %s166 = scalar_select %p165, %s164, 63
      %s167 = smul.addr %s166, 3
      %s168 = smul.addr %s167, 4
      %s169 = scalar_lea.vmem %s0, %s168
      %s170 = smul.u32 32, %s14
      %s171 = smul.u32 32, %s14
      %p172 = scmp.lt.s32.totalorder %s171, 63
      %s173 = scalar_select %p172, %s171, 63
      %s174 = smul.addr %s173, 8
      %s175 = scalar_lea.vmem %s3, %s174
      %s176 = smul.u32 32, %s14
      %v177 = vld [vmem:[%s169] sm:$0xff]
      %v178 = vld [vmem:[%s169 + $0x8] sm:$0xf]
      %v179 = vld [vmem:[%s169 + $0xc] sm:$0xff]
      %v180 = vld [vmem:[%s169 + $0x14] sm:$0xf]
      %v181 = vld [vmem:[%s169 + $0x18] sm:$0xff]
      %v182 = vld [vmem:[%s169 + $0x20] sm:$0xf]
      %v183 = vld [vmem:[%s169 + $0x24] sm:$0xff]
      %v184 = vld [vmem:[%s169 + $0x2c] sm:$0xf]
      %v185 = vld [vmem:[%s169 + $0x30] sm:$0xff]
      %v186 = vld [vmem:[%s169 + $0x38] sm:$0xf]
      %v187 = vld [vmem:[%s169 + $0x3c] sm:$0xff]
      %v188 = vld [vmem:[%s169 + $0x44] sm:$0xf]
      %v189 = vld [vmem:[%s169 + $0x48] sm:$0xff]
      %v190 = vld [vmem:[%s169 + $0x50] sm:$0xf]
      %v191 = vld [vmem:[%s169 + $0x54] sm:$0xff]
      %v192 = vld [vmem:[%s169 + $0x5c] sm:$0xf]
      %v193 = vld [vmem:[%s169 + $0x60] sm:$0xff]
      %v194 = vld [vmem:[%s169 + $0x68] sm:$0xf]
      %v195 = vld [vmem:[%s169 + $0x6c] sm:$0xff]
      %v196 = vld [vmem:[%s169 + $0x74] sm:$0xf]
      %v197 = vld [vmem:[%s169 + $0x78] sm:$0xff]
      %v198 = vld [vmem:[%s169 + $0x80] sm:$0xf]
      %v199 = vld [vmem:[%s169 + $0x84] sm:$0xff]
      %v200 = vld [vmem:[%s169 + $0x8c] sm:$0xf]
      %v201 = vld [vmem:[%s169 + $0x90] sm:$0xff]
      %v202 = vld [vmem:[%s169 + $0x98] sm:$0xf]
      %v203 = vld [vmem:[%s169 + $0x9c] sm:$0xff]
      %v204 = vld [vmem:[%s169 + $0xa4] sm:$0xf]
      %v205 = vld [vmem:[%s169 + $0xa8] sm:$0xff]
      %v206 = vld [vmem:[%s169 + $0xb0] sm:$0xf]
      %v207 = vld [vmem:[%s169 + $0xb4] sm:$0xff]
      %v208 = vld [vmem:[%s169 + $0xbc] sm:$0xf]
      %v209 = vld [vmem:[%s169 + $0xc0] sm:$0xff]
      %v210 = vld [vmem:[%s169 + $0xc8] sm:$0xf]
      %v211 = vld [vmem:[%s169 + $0xcc] sm:$0xff]
      %v212 = vld [vmem:[%s169 + $0xd4] sm:$0xf]
      %v213 = vld [vmem:[%s169 + $0xd8] sm:$0xff]
      %v214 = vld [vmem:[%s169 + $0xe0] sm:$0xf]
      %v215 = vld [vmem:[%s169 + $0xe4] sm:$0xff]
      %v216 = vld [vmem:[%s169 + $0xec] sm:$0xf]
      %v217 = vld [vmem:[%s169 + $0xf0] sm:$0xff]
      %v218 = vld [vmem:[%s169 + $0xf8] sm:$0xf]
      %v219 = vld [vmem:[%s169 + $0xfc] sm:$0xff]
      %v220 = vld [vmem:[%s169 + $0x104] sm:$0xf]
      %v221 = vld [vmem:[%s169 + $0x108] sm:$0xff]
      %v222 = vld [vmem:[%s169 + $0x110] sm:$0xf]
      %v223 = vld [vmem:[%s169 + $0x114] sm:$0xff]
      %v224 = vld [vmem:[%s169 + $0x11c] sm:$0xf]
      %v225 = vld [vmem:[%s169 + $0x120] sm:$0xff]
      %v226 = vld [vmem:[%s169 + $0x128] sm:$0xf]
      %v227 = vld [vmem:[%s169 + $0x12c] sm:$0xff]
      %v228 = vld [vmem:[%s169 + $0x134] sm:$0xf]
      %v229 = vld [vmem:[%s169 + $0x138] sm:$0xff]
      %v230 = vld [vmem:[%s169 + $0x140] sm:$0xf]
      %v231 = vld [vmem:[%s169 + $0x144] sm:$0xff]
      %v232 = vld [vmem:[%s169 + $0x14c] sm:$0xf]
      %v233 = vld [vmem:[%s169 + $0x150] sm:$0xff]
      %v234 = vld [vmem:[%s169 + $0x158] sm:$0xf]
      %v235 = vld [vmem:[%s169 + $0x15c] sm:$0xff]
      %v236 = vld [vmem:[%s169 + $0x164] sm:$0xf]
      %v237 = vld [vmem:[%s169 + $0x168] sm:$0xff]
      %v238 = vld [vmem:[%s169 + $0x170] sm:$0xf]
      %v239 = vld [vmem:[%s169 + $0x174] sm:$0xff]
      %v240 = vld [vmem:[%s169 + $0x17c] sm:$0xf]
      %v241 = vld [vmem:[%s1] sm:$0xf]
      %v242 = vld [vmem:[%s1 + $0x4] sm:$0xf]
      %v243 = vld [vmem:[%s1 + $0x8] sm:$0xf]
      %v244 = vld [vmem:[%s1 + $0xc] sm:$0xf]
      %v245 = vld [vmem:[%s1 + $0x10] sm:$0xf]
      %v246 = vld [vmem:[%s1 + $0x14] sm:$0xf]
      %v247 = vld [vmem:[%s1 + $0x18] sm:$0xf]
      %v248 = vld [vmem:[%s1 + $0x1c] sm:$0xf]
      %v249 = vld [vmem:[%s1 + $0x20] sm:$0xf]
      %v250 = vld [vmem:[%s1 + $0x24] sm:$0xf]
      %v251 = vld [vmem:[%s1 + $0x28] sm:$0xf]
      %v252 = vld [vmem:[%s1 + $0x2c] sm:$0xf]
      %v253 = vld [vmem:[%s1 + $0x30] sm:$0xf]
      %v254 = vld [vmem:[%s1 + $0x34] sm:$0xf]
      %v255 = vld [vmem:[%s1 + $0x38] sm:$0xf]
      %v256 = vld [vmem:[%s1 + $0x3c] sm:$0xf]
      %v257 = vld [vmem:[%s1 + $0x40] sm:$0xf]
      %v258 = vld [vmem:[%s1 + $0x44] sm:$0xf]
      %v259 = vld [vmem:[%s1 + $0x48] sm:$0xf]
      %v260 = vld [vmem:[%s1 + $0x4c] sm:$0xf]
      %v261 = vld [vmem:[%s1 + $0x50] sm:$0xf]
      %v262 = vld [vmem:[%s1 + $0x54] sm:$0xf]
      %v263 = vld [vmem:[%s1 + $0x58] sm:$0xf]
      %v264 = vld [vmem:[%s1 + $0x5c] sm:$0xf]
      %v265 = vld [vmem:[%s1 + $0x60] sm:$0xf]
      %v266 = vld [vmem:[%s1 + $0x64] sm:$0xf]
      %v267 = vld [vmem:[%s1 + $0x68] sm:$0xf]
      %v268 = vld [vmem:[%s1 + $0x6c] sm:$0xf]
      %v269 = vld [vmem:[%s1 + $0x70] sm:$0xf]
      %v270 = vld [vmem:[%s1 + $0x74] sm:$0xf]
      %v271 = vld [vmem:[%s1 + $0x78] sm:$0xf]
      %v272 = vld [vmem:[%s1 + $0x7c] sm:$0xf]
      %v273 = vld [vmem:[%s1 + $0x80] sm:$0xf]
      %v274 = vld [vmem:[%s1 + $0x84] sm:$0xf]
      %v275 = vld [vmem:[%s1 + $0x88] sm:$0xf]
      %v276 = vld [vmem:[%s1 + $0x8c] sm:$0xf]
      %v277 = vld [vmem:[%s1 + $0x90] sm:$0xf]
      %v278 = vld [vmem:[%s1 + $0x94] sm:$0xf]
      %v279 = vld [vmem:[%s1 + $0x98] sm:$0xf]
      %v280 = vld [vmem:[%s1 + $0x9c] sm:$0xf]
      %v281 = vld [vmem:[%s1 + $0xa0] sm:$0xf]
      %v282 = vld [vmem:[%s1 + $0xa4] sm:$0xf]
      %v283 = vld [vmem:[%s1 + $0xa8] sm:$0xf]
      %v284 = vld [vmem:[%s1 + $0xac] sm:$0xf]
      %v285 = vld [vmem:[%s1 + $0xb0] sm:$0xf]
      %v286 = vld [vmem:[%s1 + $0xb4] sm:$0xf]
      %v287 = vld [vmem:[%s1 + $0xb8] sm:$0xf]
      %v288 = vld [vmem:[%s1 + $0xbc] sm:$0xf]
      %v289 = vld [vmem:[%s2] sm:$0x1]
      %v291 = vperm.slane %v289, 0
      %v357 = vunpack.c.l.b16 %v177
      %v358 = vunpack.c.h.b16 %v177
      %v359 = vunpack.c.l.b16 %v178
      %v360 = vunpack.c.l.b16 %v179
      %v361 = vunpack.c.h.b16 %v179
      %v362 = vunpack.c.l.b16 %v180
      %v363 = vunpack.c.l.b16 %v181
      %v364 = vunpack.c.h.b16 %v181
      %v365 = vunpack.c.l.b16 %v182
      %v366 = vunpack.c.l.b16 %v183
      %v367 = vunpack.c.h.b16 %v183
      %v368 = vunpack.c.l.b16 %v184
      %v369 = vunpack.c.l.b16 %v185
      %v370 = vunpack.c.h.b16 %v185
      %v371 = vunpack.c.l.b16 %v186
      %v372 = vunpack.c.l.b16 %v187
      %v373 = vunpack.c.h.b16 %v187
      %v374 = vunpack.c.l.b16 %v188
      %v375 = vunpack.c.l.b16 %v189
      %v376 = vunpack.c.h.b16 %v189
      %v377 = vunpack.c.l.b16 %v190
      %v378 = vunpack.c.l.b16 %v191
      %v379 = vunpack.c.h.b16 %v191
      %v380 = vunpack.c.l.b16 %v192
      %v381 = vunpack.c.l.b16 %v193
      %v382 = vunpack.c.h.b16 %v193
      %v383 = vunpack.c.l.b16 %v194
      %v384 = vunpack.c.l.b16 %v195
      %v385 = vunpack.c.h.b16 %v195
      %v386 = vunpack.c.l.b16 %v196
      %v387 = vunpack.c.l.b16 %v197
      %v388 = vunpack.c.h.b16 %v197
      %v389 = vunpack.c.l.b16 %v198
      %v390 = vunpack.c.l.b16 %v199
      %v391 = vunpack.c.h.b16 %v199
      %v392 = vunpack.c.l.b16 %v200
      %v393 = vunpack.c.l.b16 %v201
      %v394 = vunpack.c.h.b16 %v201
      %v395 = vunpack.c.l.b16 %v202
      %v396 = vunpack.c.l.b16 %v203
      %v397 = vunpack.c.h.b16 %v203
      %v398 = vunpack.c.l.b16 %v204
      %v399 = vunpack.c.l.b16 %v205
      %v400 = vunpack.c.h.b16 %v205
      %v401 = vunpack.c.l.b16 %v206
      %v402 = vunpack.c.l.b16 %v207
      %v403 = vunpack.c.h.b16 %v207
      %v404 = vunpack.c.l.b16 %v208
      %v405 = vunpack.c.l.b16 %v209
      %v406 = vunpack.c.h.b16 %v209
      %v407 = vunpack.c.l.b16 %v210
      %v408 = vunpack.c.l.b16 %v211
      %v409 = vunpack.c.h.b16 %v211
      %v410 = vunpack.c.l.b16 %v212
      %v411 = vunpack.c.l.b16 %v213
      %v412 = vunpack.c.h.b16 %v213
      %v413 = vunpack.c.l.b16 %v214
      %v414 = vunpack.c.l.b16 %v215
      %v415 = vunpack.c.h.b16 %v215
      %v416 = vunpack.c.l.b16 %v216
      %v417 = vunpack.c.l.b16 %v217
      %v418 = vunpack.c.h.b16 %v217
      %v419 = vunpack.c.l.b16 %v218
      %v420 = vunpack.c.l.b16 %v219
      %v421 = vunpack.c.h.b16 %v219
      %v422 = vunpack.c.l.b16 %v220
      %v423 = vunpack.c.l.b16 %v221
      %v424 = vunpack.c.h.b16 %v221
      %v425 = vunpack.c.l.b16 %v222
      %v426 = vunpack.c.l.b16 %v223
      %v427 = vunpack.c.h.b16 %v223
      %v428 = vunpack.c.l.b16 %v224
      %v429 = vunpack.c.l.b16 %v225
      %v430 = vunpack.c.h.b16 %v225
      %v431 = vunpack.c.l.b16 %v226
      %v432 = vunpack.c.l.b16 %v227
      %v433 = vunpack.c.h.b16 %v227
      %v434 = vunpack.c.l.b16 %v228
      %v435 = vunpack.c.l.b16 %v229
      %v436 = vunpack.c.h.b16 %v229
      %v437 = vunpack.c.l.b16 %v230
      %v438 = vunpack.c.l.b16 %v231
      %v439 = vunpack.c.h.b16 %v231
      %v440 = vunpack.c.l.b16 %v232
      %v441 = vunpack.c.l.b16 %v233
      %v442 = vunpack.c.h.b16 %v233
      %v443 = vunpack.c.l.b16 %v234
      %v444 = vunpack.c.l.b16 %v235
      %v445 = vunpack.c.h.b16 %v235
      %v446 = vunpack.c.l.b16 %v236
      %v447 = vunpack.c.l.b16 %v237
      %v448 = vunpack.c.h.b16 %v237
      %v449 = vunpack.c.l.b16 %v238
      %v450 = vunpack.c.l.b16 %v239
      %v451 = vunpack.c.h.b16 %v239
      %v452 = vunpack.c.l.b16 %v240
      %v453 = vpack.c.b16 %v360, %v357
      %v454 = vpack.c.b16 %v361, %v358
      %v455 = vpack.c.b16 %v362, %v359
      %v456 = vpack.c.b16 %v366, %v363
      %v457 = vpack.c.b16 %v367, %v364
      %v458 = vpack.c.b16 %v368, %v365
      %v459 = vpack.c.b16 %v372, %v369
      %v460 = vpack.c.b16 %v373, %v370
      %v461 = vpack.c.b16 %v374, %v371
      %v462 = vpack.c.b16 %v378, %v375
      %v463 = vpack.c.b16 %v379, %v376
      %v464 = vpack.c.b16 %v380, %v377
      %v465 = vpack.c.b16 %v384, %v381
      %v466 = vpack.c.b16 %v385, %v382
      %v467 = vpack.c.b16 %v386, %v383
      %v468 = vpack.c.b16 %v390, %v387
      %v469 = vpack.c.b16 %v391, %v388
      %v470 = vpack.c.b16 %v392, %v389
      %v471 = vpack.c.b16 %v396, %v393
      %v472 = vpack.c.b16 %v397, %v394
      %v473 = vpack.c.b16 %v398, %v395
      %v474 = vpack.c.b16 %v402, %v399
      %v475 = vpack.c.b16 %v403, %v400
      %v476 = vpack.c.b16 %v404, %v401
      %v477 = vpack.c.b16 %v408, %v405
      %v478 = vpack.c.b16 %v409, %v406
      %v479 = vpack.c.b16 %v410, %v407
      %v480 = vpack.c.b16 %v414, %v411
      %v481 = vpack.c.b16 %v415, %v412
      %v482 = vpack.c.b16 %v416, %v413
      %v483 = vpack.c.b16 %v420, %v417
      %v484 = vpack.c.b16 %v421, %v418
      %v485 = vpack.c.b16 %v422, %v419
      %v486 = vpack.c.b16 %v426, %v423
      %v487 = vpack.c.b16 %v427, %v424
      %v488 = vpack.c.b16 %v428, %v425
      %v489 = vpack.c.b16 %v432, %v429
      %v490 = vpack.c.b16 %v433, %v430
      %v491 = vpack.c.b16 %v434, %v431
      %v492 = vpack.c.b16 %v438, %v435
      %v493 = vpack.c.b16 %v439, %v436
      %v494 = vpack.c.b16 %v440, %v437
      %v495 = vpack.c.b16 %v444, %v441
      %v496 = vpack.c.b16 %v445, %v442
      %v497 = vpack.c.b16 %v446, %v443
      %v498 = vpack.c.b16 %v450, %v447
      %v499 = vpack.c.b16 %v451, %v448
      %v500 = vpack.c.b16 %v452, %v449
      %v597 = vunpack.c.l.b16 %v241
      %v598 = vunpack.c.l.b16 %v242
      %v599 = vunpack.c.l.b16 %v243
      %v600 = vunpack.c.l.b16 %v244
      %v601 = vunpack.c.l.b16 %v245
      %v602 = vunpack.c.l.b16 %v246
      %v603 = vunpack.c.l.b16 %v247
      %v604 = vunpack.c.l.b16 %v248
      %v605 = vunpack.c.l.b16 %v249
      %v606 = vunpack.c.l.b16 %v250
      %v607 = vunpack.c.l.b16 %v251
      %v608 = vunpack.c.l.b16 %v252
      %v609 = vunpack.c.l.b16 %v253
      %v610 = vunpack.c.l.b16 %v254
      %v611 = vunpack.c.l.b16 %v255
      %v612 = vunpack.c.l.b16 %v256
      %v613 = vunpack.c.l.b16 %v257
      %v614 = vunpack.c.l.b16 %v258
      %v615 = vunpack.c.l.b16 %v259
      %v616 = vunpack.c.l.b16 %v260
      %v617 = vunpack.c.l.b16 %v261
      %v618 = vunpack.c.l.b16 %v262
      %v619 = vunpack.c.l.b16 %v263
      %v620 = vunpack.c.l.b16 %v264
      %v621 = vunpack.c.l.b16 %v265
      %v622 = vunpack.c.l.b16 %v266
      %v623 = vunpack.c.l.b16 %v267
      %v624 = vunpack.c.l.b16 %v268
      %v625 = vunpack.c.l.b16 %v269
      %v626 = vunpack.c.l.b16 %v270
      %v627 = vunpack.c.l.b16 %v271
      %v628 = vunpack.c.l.b16 %v272
      %v629 = vunpack.c.l.b16 %v273
      %v630 = vunpack.c.l.b16 %v274
      %v631 = vunpack.c.l.b16 %v275
      %v632 = vunpack.c.l.b16 %v276
      %v633 = vunpack.c.l.b16 %v277
      %v634 = vunpack.c.l.b16 %v278
      %v635 = vunpack.c.l.b16 %v279
      %v636 = vunpack.c.l.b16 %v280
      %v637 = vunpack.c.l.b16 %v281
      %v638 = vunpack.c.l.b16 %v282
      %v639 = vunpack.c.l.b16 %v283
      %v640 = vunpack.c.l.b16 %v284
      %v641 = vunpack.c.l.b16 %v285
      %v642 = vunpack.c.l.b16 %v286
      %v643 = vunpack.c.l.b16 %v287
      %v644 = vunpack.c.l.b16 %v288
      %v645 = vpack.c.b16 %v598, %v597
      %v646 = vpack.c.b16 %v600, %v599
      %v647 = vpack.c.b16 %v602, %v601
      %v648 = vpack.c.b16 %v604, %v603
      %v649 = vpack.c.b16 %v606, %v605
      %v650 = vpack.c.b16 %v608, %v607
      %v651 = vpack.c.b16 %v610, %v609
      %v652 = vpack.c.b16 %v612, %v611
      %v653 = vpack.c.b16 %v614, %v613
      %v654 = vpack.c.b16 %v616, %v615
      %v655 = vpack.c.b16 %v618, %v617
      %v656 = vpack.c.b16 %v620, %v619
      %v657 = vpack.c.b16 %v622, %v621
      %v658 = vpack.c.b16 %v624, %v623
      %v659 = vpack.c.b16 %v626, %v625
      %v660 = vpack.c.b16 %v628, %v627
      %v661 = vpack.c.b16 %v630, %v629
      %v662 = vpack.c.b16 %v632, %v631
      %v663 = vpack.c.b16 %v634, %v633
      %v664 = vpack.c.b16 %v636, %v635
      %v665 = vpack.c.b16 %v638, %v637
      %v666 = vpack.c.b16 %v640, %v639
      %v667 = vpack.c.b16 %v642, %v641
      %v668 = vpack.c.b16 %v644, %v643
      %693 = vmatpush.bf16.msra.mxu0 %v652
      %694 = vmatpush.bf16.msra.mxu0 %v651
      %695 = vmatpush.bf16.msra.mxu0 %v650
      %696 = vmatpush.bf16.msra.mxu0 %v649
      %697 = vmatpush.bf16.msra.mxu0 %v648
      %698 = vmatpush.bf16.msra.mxu0 %v647
      %699 = vmatpush.bf16.msra.mxu0 %v646
      %700 = vmatpush.bf16.msra.mxu0 %v645
      %701 = vmatmul.bf16.gmra.mxu0 %v453
      %v702 = vpop.f32.mrf.mxu0
      %v703 = vadd.f32 %v291, %v702
      %v704 = vpop.f32.mrf.mxu0
      %v705 = vadd.f32 %v291, %v704
      %706 = vmatmul.bf16.gmra.mxu0 %v456
      %v707 = vpop.f32.mrf.mxu0
      %v708 = vadd.f32 %v291, %v707
      %v709 = vpop.f32.mrf.mxu0
      %v710 = vadd.f32 %v291, %v709
      %711 = vmatmul.bf16.gmra.mxu0 %v459
      %v712 = vpop.f32.mrf.mxu0
      %v713 = vadd.f32 %v291, %v712
      %v714 = vpop.f32.mrf.mxu0
      %v715 = vadd.f32 %v291, %v714
      %716 = vmatmul.bf16.gmra.mxu0 %v462
      %v717 = vpop.f32.mrf.mxu0
      %v718 = vadd.f32 %v291, %v717
      %v719 = vpop.f32.mrf.mxu0
      %v720 = vadd.f32 %v291, %v719
      %721 = vmatmul.bf16.gmra.mxu0 %v465
      %v722 = vpop.f32.mrf.mxu0
      %v723 = vadd.f32 %v291, %v722
      %v724 = vpop.f32.mrf.mxu0
      %v725 = vadd.f32 %v291, %v724
      %726 = vmatmul.bf16.gmra.mxu0 %v468
      %v727 = vpop.f32.mrf.mxu0
      %v728 = vadd.f32 %v291, %v727
      %v729 = vpop.f32.mrf.mxu0
      %v730 = vadd.f32 %v291, %v729
      %731 = vmatmul.bf16.gmra.mxu0 %v471
      %v732 = vpop.f32.mrf.mxu0
      %v733 = vadd.f32 %v291, %v732
      %v734 = vpop.f32.mrf.mxu0
      %v735 = vadd.f32 %v291, %v734
      %736 = vmatmul.bf16.gmra.mxu0 %v474
      %v737 = vpop.f32.mrf.mxu0
      %v738 = vadd.f32 %v291, %v737
      %v739 = vpop.f32.mrf.mxu0
      %v740 = vadd.f32 %v291, %v739
      %741 = vmatmul.bf16.gmra.mxu0 %v477
      %v742 = vpop.f32.mrf.mxu0
      %v743 = vadd.f32 %v291, %v742
      %v744 = vpop.f32.mrf.mxu0
      %v745 = vadd.f32 %v291, %v744
      %746 = vmatmul.bf16.gmra.mxu0 %v480
      %v747 = vpop.f32.mrf.mxu0
      %v748 = vadd.f32 %v291, %v747
      %v749 = vpop.f32.mrf.mxu0
      %v750 = vadd.f32 %v291, %v749
      %751 = vmatmul.bf16.gmra.mxu0 %v483
      %v752 = vpop.f32.mrf.mxu0
      %v753 = vadd.f32 %v291, %v752
      %v754 = vpop.f32.mrf.mxu0
      %v755 = vadd.f32 %v291, %v754
      %756 = vmatmul.bf16.gmra.mxu0 %v486
      %v757 = vpop.f32.mrf.mxu0
      %v758 = vadd.f32 %v291, %v757
      %v759 = vpop.f32.mrf.mxu0
      %v760 = vadd.f32 %v291, %v759
      %761 = vmatmul.bf16.gmra.mxu0 %v489
      %v762 = vpop.f32.mrf.mxu0
      %v763 = vadd.f32 %v291, %v762
      %v764 = vpop.f32.mrf.mxu0
      %v765 = vadd.f32 %v291, %v764
      %766 = vmatmul.bf16.gmra.mxu0 %v492
      %v767 = vpop.f32.mrf.mxu0
      %v768 = vadd.f32 %v291, %v767
      %v769 = vpop.f32.mrf.mxu0
      %v770 = vadd.f32 %v291, %v769
      %771 = vmatmul.bf16.gmra.mxu0 %v495
      %v772 = vpop.f32.mrf.mxu0
      %v773 = vadd.f32 %v291, %v772
      %v774 = vpop.f32.mrf.mxu0
      %v775 = vadd.f32 %v291, %v774
      %776 = vmatmul.bf16.gmra.mxu0 %v498
      %v777 = vpop.f32.mrf.mxu0
      %v778 = vadd.f32 %v291, %v777
      %v779 = vpop.f32.mrf.mxu0
      %v780 = vadd.f32 %v291, %v779
      %781 = vdwg.mxu0
      %782 = vmatpush.bf16.msra.mxu0 %v660
      %783 = vmatpush.bf16.msra.mxu0 %v659
      %784 = vmatpush.bf16.msra.mxu0 %v658
      %785 = vmatpush.bf16.msra.mxu0 %v657
      %786 = vmatpush.bf16.msra.mxu0 %v656
      %787 = vmatpush.bf16.msra.mxu0 %v655
      %788 = vmatpush.bf16.msra.mxu0 %v654
      %789 = vmatpush.bf16.msra.mxu0 %v653
      %790 = vmatmul.bf16.gmra.mxu0 %v454
      %v791 = vpop.f32.mrf.mxu0
      %v792 = vadd.f32 %v703, %v791
      %v793 = vpop.f32.mrf.mxu0
      %v794 = vadd.f32 %v705, %v793
      %795 = vmatmul.bf16.gmra.mxu0 %v457
      %v796 = vpop.f32.mrf.mxu0
      %v797 = vadd.f32 %v708, %v796
      %v798 = vpop.f32.mrf.mxu0
      %v799 = vadd.f32 %v710, %v798
      %800 = vmatmul.bf16.gmra.mxu0 %v460
      %v801 = vpop.f32.mrf.mxu0
      %v802 = vadd.f32 %v713, %v801
      %v803 = vpop.f32.mrf.mxu0
      %v804 = vadd.f32 %v715, %v803
      %805 = vmatmul.bf16.gmra.mxu0 %v463
      %v806 = vpop.f32.mrf.mxu0
      %v807 = vadd.f32 %v718, %v806
      %v808 = vpop.f32.mrf.mxu0
      %v809 = vadd.f32 %v720, %v808
      %810 = vmatmul.bf16.gmra.mxu0 %v466
      %v811 = vpop.f32.mrf.mxu0
      %v812 = vadd.f32 %v723, %v811
      %v813 = vpop.f32.mrf.mxu0
      %v814 = vadd.f32 %v725, %v813
      %815 = vmatmul.bf16.gmra.mxu0 %v469
      %v816 = vpop.f32.mrf.mxu0
      %v817 = vadd.f32 %v728, %v816
      %v818 = vpop.f32.mrf.mxu0
      %v819 = vadd.f32 %v730, %v818
      %820 = vmatmul.bf16.gmra.mxu0 %v472
      %v821 = vpop.f32.mrf.mxu0
      %v822 = vadd.f32 %v733, %v821
      %v823 = vpop.f32.mrf.mxu0
      %v824 = vadd.f32 %v735, %v823
      %825 = vmatmul.bf16.gmra.mxu0 %v475
      %v826 = vpop.f32.mrf.mxu0
      %v827 = vadd.f32 %v738, %v826
      %v828 = vpop.f32.mrf.mxu0
      %v829 = vadd.f32 %v740, %v828
      %830 = vmatmul.bf16.gmra.mxu0 %v478
      %v831 = vpop.f32.mrf.mxu0
      %v832 = vadd.f32 %v743, %v831
      %v833 = vpop.f32.mrf.mxu0
      %v834 = vadd.f32 %v745, %v833
      %835 = vmatmul.bf16.gmra.mxu0 %v481
      %v836 = vpop.f32.mrf.mxu0
      %v837 = vadd.f32 %v748, %v836
      %v838 = vpop.f32.mrf.mxu0
      %v839 = vadd.f32 %v750, %v838
      %840 = vmatmul.bf16.gmra.mxu0 %v484
      %v841 = vpop.f32.mrf.mxu0
      %v842 = vadd.f32 %v753, %v841
      %v843 = vpop.f32.mrf.mxu0
      %v844 = vadd.f32 %v755, %v843
      %845 = vmatmul.bf16.gmra.mxu0 %v487
      %v846 = vpop.f32.mrf.mxu0
      %v847 = vadd.f32 %v758, %v846
      %v848 = vpop.f32.mrf.mxu0
      %v849 = vadd.f32 %v760, %v848
      %850 = vmatmul.bf16.gmra.mxu0 %v490
      %v851 = vpop.f32.mrf.mxu0
      %v852 = vadd.f32 %v763, %v851
      %v853 = vpop.f32.mrf.mxu0
      %v854 = vadd.f32 %v765, %v853
      %855 = vmatmul.bf16.gmra.mxu0 %v493
      %v856 = vpop.f32.mrf.mxu0
      %v857 = vadd.f32 %v768, %v856
      %v858 = vpop.f32.mrf.mxu0
      %v859 = vadd.f32 %v770, %v858
      %860 = vmatmul.bf16.gmra.mxu0 %v496
      %v861 = vpop.f32.mrf.mxu0
      %v862 = vadd.f32 %v773, %v861
      %v863 = vpop.f32.mrf.mxu0
      %v864 = vadd.f32 %v775, %v863
      %865 = vmatmul.bf16.gmra.mxu0 %v499
      %v866 = vpop.f32.mrf.mxu0
      %v867 = vadd.f32 %v778, %v866
      %v868 = vpop.f32.mrf.mxu0
      %v869 = vadd.f32 %v780, %v868
      %870 = vdwg.mxu0
      %871 = vmatpush.bf16.msra.mxu0 %v668
      %872 = vmatpush.bf16.msra.mxu0 %v667
      %873 = vmatpush.bf16.msra.mxu0 %v666
      %874 = vmatpush.bf16.msra.mxu0 %v665
      %875 = vmatpush.bf16.msra.mxu0 %v664
      %876 = vmatpush.bf16.msra.mxu0 %v663
      %877 = vmatpush.bf16.msra.mxu0 %v662
      %878 = vmatpush.bf16.msra.mxu0 %v661
      %879 = vmatmul.bf16.gmra.mxu0 %v455
      %v880 = vpop.f32.mrf.mxu0
      %v881 = vadd.f32 %v792, %v880
      %v882 = vpop.f32.mrf.mxu0
      %v883 = vadd.f32 %v794, %v882
      %884 = vmatmul.bf16.gmra.mxu0 %v458
      %v885 = vpop.f32.mrf.mxu0
      %v886 = vadd.f32 %v797, %v885
      %v887 = vpop.f32.mrf.mxu0
      %v888 = vadd.f32 %v799, %v887
      %889 = vmatmul.bf16.gmra.mxu0 %v461
      %v890 = vpop.f32.mrf.mxu0
      %v891 = vadd.f32 %v802, %v890
      %v892 = vpop.f32.mrf.mxu0
      %v893 = vadd.f32 %v804, %v892
      %894 = vmatmul.bf16.gmra.mxu0 %v464
      %v895 = vpop.f32.mrf.mxu0
      %v896 = vadd.f32 %v807, %v895
      %v897 = vpop.f32.mrf.mxu0
      %v898 = vadd.f32 %v809, %v897
      %899 = vmatmul.bf16.gmra.mxu0 %v467
      %v900 = vpop.f32.mrf.mxu0
      %v901 = vadd.f32 %v812, %v900
      %v902 = vpop.f32.mrf.mxu0
      %v903 = vadd.f32 %v814, %v902
      %904 = vmatmul.bf16.gmra.mxu0 %v470
      %v905 = vpop.f32.mrf.mxu0
      %v906 = vadd.f32 %v817, %v905
      %v907 = vpop.f32.mrf.mxu0
      %v908 = vadd.f32 %v819, %v907
      %909 = vmatmul.bf16.gmra.mxu0 %v473
      %v910 = vpop.f32.mrf.mxu0
      %v911 = vadd.f32 %v822, %v910
      %v912 = vpop.f32.mrf.mxu0
      %v913 = vadd.f32 %v824, %v912
      %914 = vmatmul.bf16.gmra.mxu0 %v476
      %v915 = vpop.f32.mrf.mxu0
      %v916 = vadd.f32 %v827, %v915
      %v917 = vpop.f32.mrf.mxu0
      %v918 = vadd.f32 %v829, %v917
      %919 = vmatmul.bf16.gmra.mxu0 %v479
      %v920 = vpop.f32.mrf.mxu0
      %v921 = vadd.f32 %v832, %v920
      %v922 = vpop.f32.mrf.mxu0
      %v923 = vadd.f32 %v834, %v922
      %924 = vmatmul.bf16.gmra.mxu0 %v482
      %v925 = vpop.f32.mrf.mxu0
      %v926 = vadd.f32 %v837, %v925
      %v927 = vpop.f32.mrf.mxu0
      %v928 = vadd.f32 %v839, %v927
      %929 = vmatmul.bf16.gmra.mxu0 %v485
      %v930 = vpop.f32.mrf.mxu0
      %v931 = vadd.f32 %v842, %v930
      %v932 = vpop.f32.mrf.mxu0
      %v933 = vadd.f32 %v844, %v932
      %934 = vmatmul.bf16.gmra.mxu0 %v488
      %v935 = vpop.f32.mrf.mxu0
      %v936 = vadd.f32 %v847, %v935
      %v937 = vpop.f32.mrf.mxu0
      %v938 = vadd.f32 %v849, %v937
      %939 = vmatmul.bf16.gmra.mxu0 %v491
      %v940 = vpop.f32.mrf.mxu0
      %v941 = vadd.f32 %v852, %v940
      %v942 = vpop.f32.mrf.mxu0
      %v943 = vadd.f32 %v854, %v942
      %944 = vmatmul.bf16.gmra.mxu0 %v494
      %v945 = vpop.f32.mrf.mxu0
      %v946 = vadd.f32 %v857, %v945
      %v947 = vpop.f32.mrf.mxu0
      %v948 = vadd.f32 %v859, %v947
      %949 = vmatmul.bf16.gmra.mxu0 %v497
      %v950 = vpop.f32.mrf.mxu0
      %v951 = vadd.f32 %v862, %v950
      %v952 = vpop.f32.mrf.mxu0
      %v953 = vadd.f32 %v864, %v952
      %954 = vmatmul.bf16.gmra.mxu0 %v500
      %v955 = vpop.f32.mrf.mxu0
      %v956 = vadd.f32 %v867, %v955
      %v957 = vpop.f32.mrf.mxu0
      %v958 = vadd.f32 %v869, %v957
      %959 = vdwg.mxu0
      %v960 = vxor.u32 %v881, 2147483648
      %v961 = vxor.u32 %v883, 2147483648
      %v962 = vxor.u32 %v886, 2147483648
      %v963 = vxor.u32 %v888, 2147483648
      %v964 = vxor.u32 %v891, 2147483648
      %v965 = vxor.u32 %v893, 2147483648
      %v966 = vxor.u32 %v896, 2147483648
      %v967 = vxor.u32 %v898, 2147483648
      %v968 = vxor.u32 %v901, 2147483648
      %v969 = vxor.u32 %v903, 2147483648
      %v970 = vxor.u32 %v906, 2147483648
      %v971 = vxor.u32 %v908, 2147483648
      %v972 = vxor.u32 %v911, 2147483648
      %v973 = vxor.u32 %v913, 2147483648
      %v974 = vxor.u32 %v916, 2147483648
      %v975 = vxor.u32 %v918, 2147483648
      %v976 = vxor.u32 %v921, 2147483648
      %v977 = vxor.u32 %v923, 2147483648
      %v978 = vxor.u32 %v926, 2147483648
      %v979 = vxor.u32 %v928, 2147483648
      %v980 = vxor.u32 %v931, 2147483648
      %v981 = vxor.u32 %v933, 2147483648
      %v982 = vxor.u32 %v936, 2147483648
      %v983 = vxor.u32 %v938, 2147483648
      %v984 = vxor.u32 %v941, 2147483648
      %v985 = vxor.u32 %v943, 2147483648
      %v986 = vxor.u32 %v946, 2147483648
      %v987 = vxor.u32 %v948, 2147483648
      %v988 = vxor.u32 %v951, 2147483648
      %v989 = vxor.u32 %v953, 2147483648
      %v990 = vxor.u32 %v956, 2147483648
      %v991 = vxor.u32 %v958, 2147483648
      %v992 = vmul.f32 %v960, 1.442695
      %v993 = vpow.pop %v992
      %v994 = vmul.f32 %v961, 1.442695
      %v995 = vpow.pop %v994
      %v996 = vmul.f32 %v962, 1.442695
      %v997 = vpow.pop %v996
      %v998 = vmul.f32 %v963, 1.442695
      %v999 = vpow.pop %v998
      %v1000 = vmul.f32 %v964, 1.442695
      %v1001 = vpow.pop %v1000
      %v1002 = vmul.f32 %v965, 1.442695
      %v1003 = vpow.pop %v1002
      %v1004 = vmul.f32 %v966, 1.442695
      %v1005 = vpow.pop %v1004
      %v1006 = vmul.f32 %v967, 1.442695
      %v1007 = vpow.pop %v1006
      %v1008 = vmul.f32 %v968, 1.442695
      %v1009 = vpow.pop %v1008
      %v1010 = vmul.f32 %v969, 1.442695
      %v1011 = vpow.pop %v1010
      %v1012 = vmul.f32 %v970, 1.442695
      %v1013 = vpow.pop %v1012
      %v1014 = vmul.f32 %v971, 1.442695
      %v1015 = vpow.pop %v1014
      %v1016 = vmul.f32 %v972, 1.442695
      %v1017 = vpow.pop %v1016
      %v1018 = vmul.f32 %v973, 1.442695
      %v1019 = vpow.pop %v1018
      %v1020 = vmul.f32 %v974, 1.442695
      %v1021 = vpow.pop %v1020
      %v1022 = vmul.f32 %v975, 1.442695
      %v1023 = vpow.pop %v1022
      %v1024 = vmul.f32 %v976, 1.442695
      %v1025 = vpow.pop %v1024
      %v1026 = vmul.f32 %v977, 1.442695
      %v1027 = vpow.pop %v1026
      %v1028 = vmul.f32 %v978, 1.442695
      %v1029 = vpow.pop %v1028
      %v1030 = vmul.f32 %v979, 1.442695
      %v1031 = vpow.pop %v1030
      %v1032 = vmul.f32 %v980, 1.442695
      %v1033 = vpow.pop %v1032
      %v1034 = vmul.f32 %v981, 1.442695
      %v1035 = vpow.pop %v1034
      %v1036 = vmul.f32 %v982, 1.442695
      %v1037 = vpow.pop %v1036
      %v1038 = vmul.f32 %v983, 1.442695
      %v1039 = vpow.pop %v1038
      %v1040 = vmul.f32 %v984, 1.442695
      %v1041 = vpow.pop %v1040
      %v1042 = vmul.f32 %v985, 1.442695
      %v1043 = vpow.pop %v1042
      %v1044 = vmul.f32 %v986, 1.442695
      %v1045 = vpow.pop %v1044
      %v1046 = vmul.f32 %v987, 1.442695
      %v1047 = vpow.pop %v1046
      %v1048 = vmul.f32 %v988, 1.442695
      %v1049 = vpow.pop %v1048
      %v1050 = vmul.f32 %v989, 1.442695
      %v1051 = vpow.pop %v1050
      %v1052 = vmul.f32 %v990, 1.442695
      %v1053 = vpow.pop %v1052
      %v1054 = vmul.f32 %v991, 1.442695
      %v1055 = vpow.pop %v1054
      %v1056 = vadd.f32 %v993, 1.0
      %v1057 = vadd.f32 %v995, 1.0
      %v1058 = vadd.f32 %v997, 1.0
      %v1059 = vadd.f32 %v999, 1.0
      %v1060 = vadd.f32 %v1001, 1.0
      %v1061 = vadd.f32 %v1003, 1.0
      %v1062 = vadd.f32 %v1005, 1.0
      %v1063 = vadd.f32 %v1007, 1.0
      %v1064 = vadd.f32 %v1009, 1.0
      %v1065 = vadd.f32 %v1011, 1.0
      %v1066 = vadd.f32 %v1013, 1.0
      %v1067 = vadd.f32 %v1015, 1.0
      %v1068 = vadd.f32 %v1017, 1.0
      %v1069 = vadd.f32 %v1019, 1.0
      %v1070 = vadd.f32 %v1021, 1.0
      %v1071 = vadd.f32 %v1023, 1.0
      %v1072 = vadd.f32 %v1025, 1.0
      %v1073 = vadd.f32 %v1027, 1.0
      %v1074 = vadd.f32 %v1029, 1.0
      %v1075 = vadd.f32 %v1031, 1.0
      %v1076 = vadd.f32 %v1033, 1.0
      %v1077 = vadd.f32 %v1035, 1.0
      %v1078 = vadd.f32 %v1037, 1.0
      %v1079 = vadd.f32 %v1039, 1.0
      %v1080 = vadd.f32 %v1041, 1.0
      %v1081 = vadd.f32 %v1043, 1.0
      %v1082 = vadd.f32 %v1045, 1.0
      %v1083 = vadd.f32 %v1047, 1.0
      %v1084 = vadd.f32 %v1049, 1.0
      %v1085 = vadd.f32 %v1051, 1.0
      %v1086 = vadd.f32 %v1053, 1.0
      %v1087 = vadd.f32 %v1055, 1.0
      %v1088 = vrcp.pop %v1056
      %v1089 = vmul.f32 %v1056, %v1088
      %v1090 = vsub.f32 1.0, %v1089
      %v1091 = vmul.f32 %v1088, %v1090
      %v1092 = vadd.f32 %v1088, %v1091
      %vm1093 = vweird.f32 %v1056
      %vm1094 = vweird.f32 %v1088
      %vm1095 = vmor %vm1093, %vm1094
      %v1096 = vsel %vm1095, %v1088, %v1092
      %v1097 = vand.u32 2147483647, %v1056
      %vm1098 = vcmp.eq.f32.partialorder %v1097, 8.507059e+37
      %v1099 = vand.u32 %v1056, 2147483648
      %v1100 = vor.u32 1.1754944e-38, %v1099
      %v1101 = vsel %vm1098, %v1100, %v1096
      %v1102 = vmul.f32 1.0, %v1101
      %v1103 = vrcp.pop %v1057
      %v1104 = vmul.f32 %v1057, %v1103
      %v1105 = vsub.f32 1.0, %v1104
      %v1106 = vmul.f32 %v1103, %v1105
      %v1107 = vadd.f32 %v1103, %v1106
      %vm1108 = vweird.f32 %v1057
      %vm1109 = vweird.f32 %v1103
      %vm1110 = vmor %vm1108, %vm1109
      %v1111 = vsel %vm1110, %v1103, %v1107
      %v1112 = vand.u32 2147483647, %v1057
      %vm1113 = vcmp.eq.f32.partialorder %v1112, 8.507059e+37
      %v1114 = vand.u32 %v1057, 2147483648
      %v1115 = vor.u32 1.1754944e-38, %v1114
      %v1116 = vsel %vm1113, %v1115, %v1111
      %v1117 = vmul.f32 1.0, %v1116
      %v1118 = vrcp.pop %v1058
      %v1119 = vmul.f32 %v1058, %v1118
      %v1120 = vsub.f32 1.0, %v1119
      %v1121 = vmul.f32 %v1118, %v1120
      %v1122 = vadd.f32 %v1118, %v1121
      %vm1123 = vweird.f32 %v1058
      %vm1124 = vweird.f32 %v1118
      %vm1125 = vmor %vm1123, %vm1124
      %v1126 = vsel %vm1125, %v1118, %v1122
      %v1127 = vand.u32 2147483647, %v1058
      %vm1128 = vcmp.eq.f32.partialorder %v1127, 8.507059e+37
      %v1129 = vand.u32 %v1058, 2147483648
      %v1130 = vor.u32 1.1754944e-38, %v1129
      %v1131 = vsel %vm1128, %v1130, %v1126
      %v1132 = vmul.f32 1.0, %v1131
      %v1133 = vrcp.pop %v1059
      %v1134 = vmul.f32 %v1059, %v1133
      %v1135 = vsub.f32 1.0, %v1134
      %v1136 = vmul.f32 %v1133, %v1135
      %v1137 = vadd.f32 %v1133, %v1136
      %vm1138 = vweird.f32 %v1059
      %vm1139 = vweird.f32 %v1133
      %vm1140 = vmor %vm1138, %vm1139
      %v1141 = vsel %vm1140, %v1133, %v1137
      %v1142 = vand.u32 2147483647, %v1059
      %vm1143 = vcmp.eq.f32.partialorder %v1142, 8.507059e+37
      %v1144 = vand.u32 %v1059, 2147483648
      %v1145 = vor.u32 1.1754944e-38, %v1144
      %v1146 = vsel %vm1143, %v1145, %v1141
      %v1147 = vmul.f32 1.0, %v1146
      %v1148 = vrcp.pop %v1060
      %v1149 = vmul.f32 %v1060, %v1148
      %v1150 = vsub.f32 1.0, %v1149
      %v1151 = vmul.f32 %v1148, %v1150
      %v1152 = vadd.f32 %v1148, %v1151
      %vm1153 = vweird.f32 %v1060
      %vm1154 = vweird.f32 %v1148
      %vm1155 = vmor %vm1153, %vm1154
      %v1156 = vsel %vm1155, %v1148, %v1152
      %v1157 = vand.u32 2147483647, %v1060
      %vm1158 = vcmp.eq.f32.partialorder %v1157, 8.507059e+37
      %v1159 = vand.u32 %v1060, 2147483648
      %v1160 = vor.u32 1.1754944e-38, %v1159
      %v1161 = vsel %vm1158, %v1160, %v1156
      %v1162 = vmul.f32 1.0, %v1161
      %v1163 = vrcp.pop %v1061
      %v1164 = vmul.f32 %v1061, %v1163
      %v1165 = vsub.f32 1.0, %v1164
      %v1166 = vmul.f32 %v1163, %v1165
      %v1167 = vadd.f32 %v1163, %v1166
      %vm1168 = vweird.f32 %v1061
      %vm1169 = vweird.f32 %v1163
      %vm1170 = vmor %vm1168, %vm1169
      %v1171 = vsel %vm1170, %v1163, %v1167
      %v1172 = vand.u32 2147483647, %v1061
      %vm1173 = vcmp.eq.f32.partialorder %v1172, 8.507059e+37
      %v1174 = vand.u32 %v1061, 2147483648
      %v1175 = vor.u32 1.1754944e-38, %v1174
      %v1176 = vsel %vm1173, %v1175, %v1171
      %v1177 = vmul.f32 1.0, %v1176
      %v1178 = vrcp.pop %v1062
      %v1179 = vmul.f32 %v1062, %v1178
      %v1180 = vsub.f32 1.0, %v1179
      %v1181 = vmul.f32 %v1178, %v1180
      %v1182 = vadd.f32 %v1178, %v1181
      %vm1183 = vweird.f32 %v1062
      %vm1184 = vweird.f32 %v1178
      %vm1185 = vmor %vm1183, %vm1184
      %v1186 = vsel %vm1185, %v1178, %v1182
      %v1187 = vand.u32 2147483647, %v1062
      %vm1188 = vcmp.eq.f32.partialorder %v1187, 8.507059e+37
      %v1189 = vand.u32 %v1062, 2147483648
      %v1190 = vor.u32 1.1754944e-38, %v1189
      %v1191 = vsel %vm1188, %v1190, %v1186
      %v1192 = vmul.f32 1.0, %v1191
      %v1193 = vrcp.pop %v1063
      %v1194 = vmul.f32 %v1063, %v1193
      %v1195 = vsub.f32 1.0, %v1194
      %v1196 = vmul.f32 %v1193, %v1195
      %v1197 = vadd.f32 %v1193, %v1196
      %vm1198 = vweird.f32 %v1063
      %vm1199 = vweird.f32 %v1193
      %vm1200 = vmor %vm1198, %vm1199
      %v1201 = vsel %vm1200, %v1193, %v1197
      %v1202 = vand.u32 2147483647, %v1063
      %vm1203 = vcmp.eq.f32.partialorder %v1202, 8.507059e+37
      %v1204 = vand.u32 %v1063, 2147483648
      %v1205 = vor.u32 1.1754944e-38, %v1204
      %v1206 = vsel %vm1203, %v1205, %v1201
      %v1207 = vmul.f32 1.0, %v1206
      %v1208 = vrcp.pop %v1064
      %v1209 = vmul.f32 %v1064, %v1208
      %v1210 = vsub.f32 1.0, %v1209
      %v1211 = vmul.f32 %v1208, %v1210
      %v1212 = vadd.f32 %v1208, %v1211
      %vm1213 = vweird.f32 %v1064
      %vm1214 = vweird.f32 %v1208
      %vm1215 = vmor %vm1213, %vm1214
      %v1216 = vsel %vm1215, %v1208, %v1212
      %v1217 = vand.u32 2147483647, %v1064
      %vm1218 = vcmp.eq.f32.partialorder %v1217, 8.507059e+37
      %v1219 = vand.u32 %v1064, 2147483648
      %v1220 = vor.u32 1.1754944e-38, %v1219
      %v1221 = vsel %vm1218, %v1220, %v1216
      %v1222 = vmul.f32 1.0, %v1221
      %v1223 = vrcp.pop %v1065
      %v1224 = vmul.f32 %v1065, %v1223
      %v1225 = vsub.f32 1.0, %v1224
      %v1226 = vmul.f32 %v1223, %v1225
      %v1227 = vadd.f32 %v1223, %v1226
      %vm1228 = vweird.f32 %v1065
      %vm1229 = vweird.f32 %v1223
      %vm1230 = vmor %vm1228, %vm1229
      %v1231 = vsel %vm1230, %v1223, %v1227
      %v1232 = vand.u32 2147483647, %v1065
      %vm1233 = vcmp.eq.f32.partialorder %v1232, 8.507059e+37
      %v1234 = vand.u32 %v1065, 2147483648
      %v1235 = vor.u32 1.1754944e-38, %v1234
      %v1236 = vsel %vm1233, %v1235, %v1231
      %v1237 = vmul.f32 1.0, %v1236
      %v1238 = vrcp.pop %v1066
      %v1239 = vmul.f32 %v1066, %v1238
      %v1240 = vsub.f32 1.0, %v1239
      %v1241 = vmul.f32 %v1238, %v1240
      %v1242 = vadd.f32 %v1238, %v1241
      %vm1243 = vweird.f32 %v1066
      %vm1244 = vweird.f32 %v1238
      %vm1245 = vmor %vm1243, %vm1244
      %v1246 = vsel %vm1245, %v1238, %v1242
      %v1247 = vand.u32 2147483647, %v1066
      %vm1248 = vcmp.eq.f32.partialorder %v1247, 8.507059e+37
      %v1249 = vand.u32 %v1066, 2147483648
      %v1250 = vor.u32 1.1754944e-38, %v1249
      %v1251 = vsel %vm1248, %v1250, %v1246
      %v1252 = vmul.f32 1.0, %v1251
      %v1253 = vrcp.pop %v1067
      %v1254 = vmul.f32 %v1067, %v1253
      %v1255 = vsub.f32 1.0, %v1254
      %v1256 = vmul.f32 %v1253, %v1255
      %v1257 = vadd.f32 %v1253, %v1256
      %vm1258 = vweird.f32 %v1067
      %vm1259 = vweird.f32 %v1253
      %vm1260 = vmor %vm1258, %vm1259
      %v1261 = vsel %vm1260, %v1253, %v1257
      %v1262 = vand.u32 2147483647, %v1067
      %vm1263 = vcmp.eq.f32.partialorder %v1262, 8.507059e+37
      %v1264 = vand.u32 %v1067, 2147483648
      %v1265 = vor.u32 1.1754944e-38, %v1264
      %v1266 = vsel %vm1263, %v1265, %v1261
      %v1267 = vmul.f32 1.0, %v1266
      %v1268 = vrcp.pop %v1068
      %v1269 = vmul.f32 %v1068, %v1268
      %v1270 = vsub.f32 1.0, %v1269
      %v1271 = vmul.f32 %v1268, %v1270
      %v1272 = vadd.f32 %v1268, %v1271
      %vm1273 = vweird.f32 %v1068
      %vm1274 = vweird.f32 %v1268
      %vm1275 = vmor %vm1273, %vm1274
      %v1276 = vsel %vm1275, %v1268, %v1272
      %v1277 = vand.u32 2147483647, %v1068
      %vm1278 = vcmp.eq.f32.partialorder %v1277, 8.507059e+37
      %v1279 = vand.u32 %v1068, 2147483648
      %v1280 = vor.u32 1.1754944e-38, %v1279
      %v1281 = vsel %vm1278, %v1280, %v1276
      %v1282 = vmul.f32 1.0, %v1281
      %v1283 = vrcp.pop %v1069
      %v1284 = vmul.f32 %v1069, %v1283
      %v1285 = vsub.f32 1.0, %v1284
      %v1286 = vmul.f32 %v1283, %v1285
      %v1287 = vadd.f32 %v1283, %v1286
      %vm1288 = vweird.f32 %v1069
      %vm1289 = vweird.f32 %v1283
      %vm1290 = vmor %vm1288, %vm1289
      %v1291 = vsel %vm1290, %v1283, %v1287
      %v1292 = vand.u32 2147483647, %v1069
      %vm1293 = vcmp.eq.f32.partialorder %v1292, 8.507059e+37
      %v1294 = vand.u32 %v1069, 2147483648
      %v1295 = vor.u32 1.1754944e-38, %v1294
      %v1296 = vsel %vm1293, %v1295, %v1291
      %v1297 = vmul.f32 1.0, %v1296
      %v1298 = vrcp.pop %v1070
      %v1299 = vmul.f32 %v1070, %v1298
      %v1300 = vsub.f32 1.0, %v1299
      %v1301 = vmul.f32 %v1298, %v1300
      %v1302 = vadd.f32 %v1298, %v1301
      %vm1303 = vweird.f32 %v1070
      %vm1304 = vweird.f32 %v1298
      %vm1305 = vmor %vm1303, %vm1304
      %v1306 = vsel %vm1305, %v1298, %v1302
      %v1307 = vand.u32 2147483647, %v1070
      %vm1308 = vcmp.eq.f32.partialorder %v1307, 8.507059e+37
      %v1309 = vand.u32 %v1070, 2147483648
      %v1310 = vor.u32 1.1754944e-38, %v1309
      %v1311 = vsel %vm1308, %v1310, %v1306
      %v1312 = vmul.f32 1.0, %v1311
      %v1313 = vrcp.pop %v1071
      %v1314 = vmul.f32 %v1071, %v1313
      %v1315 = vsub.f32 1.0, %v1314
      %v1316 = vmul.f32 %v1313, %v1315
      %v1317 = vadd.f32 %v1313, %v1316
      %vm1318 = vweird.f32 %v1071
      %vm1319 = vweird.f32 %v1313
      %vm1320 = vmor %vm1318, %vm1319
      %v1321 = vsel %vm1320, %v1313, %v1317
      %v1322 = vand.u32 2147483647, %v1071
      %vm1323 = vcmp.eq.f32.partialorder %v1322, 8.507059e+37
      %v1324 = vand.u32 %v1071, 2147483648
      %v1325 = vor.u32 1.1754944e-38, %v1324
      %v1326 = vsel %vm1323, %v1325, %v1321
      %v1327 = vmul.f32 1.0, %v1326
      %v1328 = vrcp.pop %v1072
      %v1329 = vmul.f32 %v1072, %v1328
      %v1330 = vsub.f32 1.0, %v1329
      %v1331 = vmul.f32 %v1328, %v1330
      %v1332 = vadd.f32 %v1328, %v1331
      %vm1333 = vweird.f32 %v1072
      %vm1334 = vweird.f32 %v1328
      %vm1335 = vmor %vm1333, %vm1334
      %v1336 = vsel %vm1335, %v1328, %v1332
      %v1337 = vand.u32 2147483647, %v1072
      %vm1338 = vcmp.eq.f32.partialorder %v1337, 8.507059e+37
      %v1339 = vand.u32 %v1072, 2147483648
      %v1340 = vor.u32 1.1754944e-38, %v1339
      %v1341 = vsel %vm1338, %v1340, %v1336
      %v1342 = vmul.f32 1.0, %v1341
      %v1343 = vrcp.pop %v1073
      %v1344 = vmul.f32 %v1073, %v1343
      %v1345 = vsub.f32 1.0, %v1344
      %v1346 = vmul.f32 %v1343, %v1345
      %v1347 = vadd.f32 %v1343, %v1346
      %vm1348 = vweird.f32 %v1073
      %vm1349 = vweird.f32 %v1343
      %vm1350 = vmor %vm1348, %vm1349
      %v1351 = vsel %vm1350, %v1343, %v1347
      %v1352 = vand.u32 2147483647, %v1073
      %vm1353 = vcmp.eq.f32.partialorder %v1352, 8.507059e+37
      %v1354 = vand.u32 %v1073, 2147483648
      %v1355 = vor.u32 1.1754944e-38, %v1354
      %v1356 = vsel %vm1353, %v1355, %v1351
      %v1357 = vmul.f32 1.0, %v1356
      %v1358 = vrcp.pop %v1074
      %v1359 = vmul.f32 %v1074, %v1358
      %v1360 = vsub.f32 1.0, %v1359
      %v1361 = vmul.f32 %v1358, %v1360
      %v1362 = vadd.f32 %v1358, %v1361
      %vm1363 = vweird.f32 %v1074
      %vm1364 = vweird.f32 %v1358
      %vm1365 = vmor %vm1363, %vm1364
      %v1366 = vsel %vm1365, %v1358, %v1362
      %v1367 = vand.u32 2147483647, %v1074
      %vm1368 = vcmp.eq.f32.partialorder %v1367, 8.507059e+37
      %v1369 = vand.u32 %v1074, 2147483648
      %v1370 = vor.u32 1.1754944e-38, %v1369
      %v1371 = vsel %vm1368, %v1370, %v1366
      %v1372 = vmul.f32 1.0, %v1371
      %v1373 = vrcp.pop %v1075
      %v1374 = vmul.f32 %v1075, %v1373
      %v1375 = vsub.f32 1.0, %v1374
      %v1376 = vmul.f32 %v1373, %v1375
      %v1377 = vadd.f32 %v1373, %v1376
      %vm1378 = vweird.f32 %v1075
      %vm1379 = vweird.f32 %v1373
      %vm1380 = vmor %vm1378, %vm1379
      %v1381 = vsel %vm1380, %v1373, %v1377
      %v1382 = vand.u32 2147483647, %v1075
      %vm1383 = vcmp.eq.f32.partialorder %v1382, 8.507059e+37
      %v1384 = vand.u32 %v1075, 2147483648
      %v1385 = vor.u32 1.1754944e-38, %v1384
      %v1386 = vsel %vm1383, %v1385, %v1381
      %v1387 = vmul.f32 1.0, %v1386
      %v1388 = vrcp.pop %v1076
      %v1389 = vmul.f32 %v1076, %v1388
      %v1390 = vsub.f32 1.0, %v1389
      %v1391 = vmul.f32 %v1388, %v1390
      %v1392 = vadd.f32 %v1388, %v1391
      %vm1393 = vweird.f32 %v1076
      %vm1394 = vweird.f32 %v1388
      %vm1395 = vmor %vm1393, %vm1394
      %v1396 = vsel %vm1395, %v1388, %v1392
      %v1397 = vand.u32 2147483647, %v1076
      %vm1398 = vcmp.eq.f32.partialorder %v1397, 8.507059e+37
      %v1399 = vand.u32 %v1076, 2147483648
      %v1400 = vor.u32 1.1754944e-38, %v1399
      %v1401 = vsel %vm1398, %v1400, %v1396
      %v1402 = vmul.f32 1.0, %v1401
      %v1403 = vrcp.pop %v1077
      %v1404 = vmul.f32 %v1077, %v1403
      %v1405 = vsub.f32 1.0, %v1404
      %v1406 = vmul.f32 %v1403, %v1405
      %v1407 = vadd.f32 %v1403, %v1406
      %vm1408 = vweird.f32 %v1077
      %vm1409 = vweird.f32 %v1403
      %vm1410 = vmor %vm1408, %vm1409
      %v1411 = vsel %vm1410, %v1403, %v1407
      %v1412 = vand.u32 2147483647, %v1077
      %vm1413 = vcmp.eq.f32.partialorder %v1412, 8.507059e+37
      %v1414 = vand.u32 %v1077, 2147483648
      %v1415 = vor.u32 1.1754944e-38, %v1414
      %v1416 = vsel %vm1413, %v1415, %v1411
      %v1417 = vmul.f32 1.0, %v1416
      %v1418 = vrcp.pop %v1078
      %v1419 = vmul.f32 %v1078, %v1418
      %v1420 = vsub.f32 1.0, %v1419
      %v1421 = vmul.f32 %v1418, %v1420
      %v1422 = vadd.f32 %v1418, %v1421
      %vm1423 = vweird.f32 %v1078
      %vm1424 = vweird.f32 %v1418
      %vm1425 = vmor %vm1423, %vm1424
      %v1426 = vsel %vm1425, %v1418, %v1422
      %v1427 = vand.u32 2147483647, %v1078
      %vm1428 = vcmp.eq.f32.partialorder %v1427, 8.507059e+37
      %v1429 = vand.u32 %v1078, 2147483648
      %v1430 = vor.u32 1.1754944e-38, %v1429
      %v1431 = vsel %vm1428, %v1430, %v1426
      %v1432 = vmul.f32 1.0, %v1431
      %v1433 = vrcp.pop %v1079
      %v1434 = vmul.f32 %v1079, %v1433
      %v1435 = vsub.f32 1.0, %v1434
      %v1436 = vmul.f32 %v1433, %v1435
      %v1437 = vadd.f32 %v1433, %v1436
      %vm1438 = vweird.f32 %v1079
      %vm1439 = vweird.f32 %v1433
      %vm1440 = vmor %vm1438, %vm1439
      %v1441 = vsel %vm1440, %v1433, %v1437
      %v1442 = vand.u32 2147483647, %v1079
      %vm1443 = vcmp.eq.f32.partialorder %v1442, 8.507059e+37
      %v1444 = vand.u32 %v1079, 2147483648
      %v1445 = vor.u32 1.1754944e-38, %v1444
      %v1446 = vsel %vm1443, %v1445, %v1441
      %v1447 = vmul.f32 1.0, %v1446
      %v1448 = vrcp.pop %v1080
      %v1449 = vmul.f32 %v1080, %v1448
      %v1450 = vsub.f32 1.0, %v1449
      %v1451 = vmul.f32 %v1448, %v1450
      %v1452 = vadd.f32 %v1448, %v1451
      %vm1453 = vweird.f32 %v1080
      %vm1454 = vweird.f32 %v1448
      %vm1455 = vmor %vm1453, %vm1454
      %v1456 = vsel %vm1455, %v1448, %v1452
      %v1457 = vand.u32 2147483647, %v1080
      %vm1458 = vcmp.eq.f32.partialorder %v1457, 8.507059e+37
      %v1459 = vand.u32 %v1080, 2147483648
      %v1460 = vor.u32 1.1754944e-38, %v1459
      %v1461 = vsel %vm1458, %v1460, %v1456
      %v1462 = vmul.f32 1.0, %v1461
      %v1463 = vrcp.pop %v1081
      %v1464 = vmul.f32 %v1081, %v1463
      %v1465 = vsub.f32 1.0, %v1464
      %v1466 = vmul.f32 %v1463, %v1465
      %v1467 = vadd.f32 %v1463, %v1466
      %vm1468 = vweird.f32 %v1081
      %vm1469 = vweird.f32 %v1463
      %vm1470 = vmor %vm1468, %vm1469
      %v1471 = vsel %vm1470, %v1463, %v1467
      %v1472 = vand.u32 2147483647, %v1081
      %vm1473 = vcmp.eq.f32.partialorder %v1472, 8.507059e+37
      %v1474 = vand.u32 %v1081, 2147483648
      %v1475 = vor.u32 1.1754944e-38, %v1474
      %v1476 = vsel %vm1473, %v1475, %v1471
      %v1477 = vmul.f32 1.0, %v1476
      %v1478 = vrcp.pop %v1082
      %v1479 = vmul.f32 %v1082, %v1478
      %v1480 = vsub.f32 1.0, %v1479
      %v1481 = vmul.f32 %v1478, %v1480
      %v1482 = vadd.f32 %v1478, %v1481
      %vm1483 = vweird.f32 %v1082
      %vm1484 = vweird.f32 %v1478
      %vm1485 = vmor %vm1483, %vm1484
      %v1486 = vsel %vm1485, %v1478, %v1482
      %v1487 = vand.u32 2147483647, %v1082
      %vm1488 = vcmp.eq.f32.partialorder %v1487, 8.507059e+37
      %v1489 = vand.u32 %v1082, 2147483648
      %v1490 = vor.u32 1.1754944e-38, %v1489
      %v1491 = vsel %vm1488, %v1490, %v1486
      %v1492 = vmul.f32 1.0, %v1491
      %v1493 = vrcp.pop %v1083
      %v1494 = vmul.f32 %v1083, %v1493
      %v1495 = vsub.f32 1.0, %v1494
      %v1496 = vmul.f32 %v1493, %v1495
      %v1497 = vadd.f32 %v1493, %v1496
      %vm1498 = vweird.f32 %v1083
      %vm1499 = vweird.f32 %v1493
      %vm1500 = vmor %vm1498, %vm1499
      %v1501 = vsel %vm1500, %v1493, %v1497
      %v1502 = vand.u32 2147483647, %v1083
      %vm1503 = vcmp.eq.f32.partialorder %v1502, 8.507059e+37
      %v1504 = vand.u32 %v1083, 2147483648
      %v1505 = vor.u32 1.1754944e-38, %v1504
      %v1506 = vsel %vm1503, %v1505, %v1501
      %v1507 = vmul.f32 1.0, %v1506
      %v1508 = vrcp.pop %v1084
      %v1509 = vmul.f32 %v1084, %v1508
      %v1510 = vsub.f32 1.0, %v1509
      %v1511 = vmul.f32 %v1508, %v1510
      %v1512 = vadd.f32 %v1508, %v1511
      %vm1513 = vweird.f32 %v1084
      %vm1514 = vweird.f32 %v1508
      %vm1515 = vmor %vm1513, %vm1514
      %v1516 = vsel %vm1515, %v1508, %v1512
      %v1517 = vand.u32 2147483647, %v1084
      %vm1518 = vcmp.eq.f32.partialorder %v1517, 8.507059e+37
      %v1519 = vand.u32 %v1084, 2147483648
      %v1520 = vor.u32 1.1754944e-38, %v1519
      %v1521 = vsel %vm1518, %v1520, %v1516
      %v1522 = vmul.f32 1.0, %v1521
      %v1523 = vrcp.pop %v1085
      %v1524 = vmul.f32 %v1085, %v1523
      %v1525 = vsub.f32 1.0, %v1524
      %v1526 = vmul.f32 %v1523, %v1525
      %v1527 = vadd.f32 %v1523, %v1526
      %vm1528 = vweird.f32 %v1085
      %vm1529 = vweird.f32 %v1523
      %vm1530 = vmor %vm1528, %vm1529
      %v1531 = vsel %vm1530, %v1523, %v1527
      %v1532 = vand.u32 2147483647, %v1085
      %vm1533 = vcmp.eq.f32.partialorder %v1532, 8.507059e+37
      %v1534 = vand.u32 %v1085, 2147483648
      %v1535 = vor.u32 1.1754944e-38, %v1534
      %v1536 = vsel %vm1533, %v1535, %v1531
      %v1537 = vmul.f32 1.0, %v1536
      %v1538 = vrcp.pop %v1086
      %v1539 = vmul.f32 %v1086, %v1538
      %v1540 = vsub.f32 1.0, %v1539
      %v1541 = vmul.f32 %v1538, %v1540
      %v1542 = vadd.f32 %v1538, %v1541
      %vm1543 = vweird.f32 %v1086
      %vm1544 = vweird.f32 %v1538
      %vm1545 = vmor %vm1543, %vm1544
      %v1546 = vsel %vm1545, %v1538, %v1542
      %v1547 = vand.u32 2147483647, %v1086
      %vm1548 = vcmp.eq.f32.partialorder %v1547, 8.507059e+37
      %v1549 = vand.u32 %v1086, 2147483648
      %v1550 = vor.u32 1.1754944e-38, %v1549
      %v1551 = vsel %vm1548, %v1550, %v1546
      %v1552 = vmul.f32 1.0, %v1551
      %v1553 = vrcp.pop %v1087
      %v1554 = vmul.f32 %v1087, %v1553
      %v1555 = vsub.f32 1.0, %v1554
      %v1556 = vmul.f32 %v1553, %v1555
      %v1557 = vadd.f32 %v1553, %v1556
      %vm1558 = vweird.f32 %v1087
      %vm1559 = vweird.f32 %v1553
      %vm1560 = vmor %vm1558, %vm1559
      %v1561 = vsel %vm1560, %v1553, %v1557
      %v1562 = vand.u32 2147483647, %v1087
      %vm1563 = vcmp.eq.f32.partialorder %v1562, 8.507059e+37
      %v1564 = vand.u32 %v1087, 2147483648
      %v1565 = vor.u32 1.1754944e-38, %v1564
      %v1566 = vsel %vm1563, %v1565, %v1561
      %v1567 = vmul.f32 1.0, %v1566
      %1568 = vst [vmem:[%s175] sm:$0xff] %v1102
      %1569 = vst [vmem:[%s175 + $0x8] sm:$0xff] %v1117
      %1570 = vst [vmem:[%s175 + $0x10] sm:$0xff] %v1132
      %1571 = vst [vmem:[%s175 + $0x18] sm:$0xff] %v1147
      %1572 = vst [vmem:[%s175 + $0x20] sm:$0xff] %v1162
      %1573 = vst [vmem:[%s175 + $0x28] sm:$0xff] %v1177
      %1574 = vst [vmem:[%s175 + $0x30] sm:$0xff] %v1192
      %1575 = vst [vmem:[%s175 + $0x38] sm:$0xff] %v1207
      %1576 = vst [vmem:[%s175 + $0x40] sm:$0xff] %v1222
      %1577 = vst [vmem:[%s175 + $0x48] sm:$0xff] %v1237
      %1578 = vst [vmem:[%s175 + $0x50] sm:$0xff] %v1252
      %1579 = vst [vmem:[%s175 + $0x58] sm:$0xff] %v1267
      %1580 = vst [vmem:[%s175 + $0x60] sm:$0xff] %v1282
      %1581 = vst [vmem:[%s175 + $0x68] sm:$0xff] %v1297
      %1582 = vst [vmem:[%s175 + $0x70] sm:$0xff] %v1312
      %1583 = vst [vmem:[%s175 + $0x78] sm:$0xff] %v1327
      %1584 = vst [vmem:[%s175 + $0x80] sm:$0xff] %v1342
      %1585 = vst [vmem:[%s175 + $0x88] sm:$0xff] %v1357
      %1586 = vst [vmem:[%s175 + $0x90] sm:$0xff] %v1372
      %1587 = vst [vmem:[%s175 + $0x98] sm:$0xff] %v1387
      %1588 = vst [vmem:[%s175 + $0xa0] sm:$0xff] %v1402
      %1589 = vst [vmem:[%s175 + $0xa8] sm:$0xff] %v1417
      %1590 = vst [vmem:[%s175 + $0xb0] sm:$0xff] %v1432
      %1591 = vst [vmem:[%s175 + $0xb8] sm:$0xff] %v1447
      %1592 = vst [vmem:[%s175 + $0xc0] sm:$0xff] %v1462
      %1593 = vst [vmem:[%s175 + $0xc8] sm:$0xff] %v1477
      %1594 = vst [vmem:[%s175 + $0xd0] sm:$0xff] %v1492
      %1595 = vst [vmem:[%s175 + $0xd8] sm:$0xff] %v1507
      %1596 = vst [vmem:[%s175 + $0xe0] sm:$0xff] %v1522
      %1597 = vst [vmem:[%s175 + $0xe8] sm:$0xff] %v1537
      %1598 = vst [vmem:[%s175 + $0xf0] sm:$0xff] %v1552
      %1599 = vst [vmem:[%s175 + $0xf8] sm:$0xff] %v1567
      %s1600 = smul.u32 32, %s14
      %p1601 = scmp.lt.s32.totalorder %s1600, 63
      %s1602 = scalar_select %p1601, %s1600, 63
      %s1603 = smul.addr %s1602, 8
      %s1604 = scalar_lea.vmem %s3, %s1603
      // Predicated region
      $region33: #{_forward_impl.5} parent=31 // pred_check
        %p1605 = pneg %p100
      $region34: #{_forward_impl.5} parent=31 // pred_check_branch
        %1607 = sbr.rel (%p1605) target = $region36
      $region35: #{_forward_impl.5} parent=31 // pred_region
        %s1608 = smul.u32 32, %s14
      $region36: #{_forward_impl.5} parent=31 // pred_fallthru
        _
    $region32: #{_forward_impl.5} parent=5 // pred_fallthru
      _
    %p1609 = scmp.le.s32.totalorder 2, %s9
    // Predicated region
    $region37: #{_forward_impl.5} parent=5 // pred_check
      %p1610 = pneg %p1609
    $region38: #{_forward_impl.5} parent=5 // pred_check_branch
      %1612 = sbr.rel (%p1610) target = $region40
    $region39: #{_forward_impl.5} parent=5 // pred_region
      %s1613 = ssub.s32 %s9, 2
      // Predicated region
      $region41: #{_forward_impl.5} parent=39 // pred_check
        %p1614 = pneg %p106
      $region42: #{_forward_impl.5} parent=39 // pred_check_branch
        %1616 = sbr.rel (%p1614) target = $region44
      $region43: #{_forward_impl.5} parent=39 // pred_region
        %s1617 = smul.u32 32, %s15
        %p1618 = scmp.lt.s32.totalorder %s1617, 63
        %s1619 = scalar_select %p1618, %s1617, 63
        %s1620 = smul.addr %s1619, 8
        %s1621 = scalar_lea.vmem %s3, %s1620
      $region44: #{_forward_impl.5} parent=39 // pred_fallthru
        _
    $region40: #{_forward_impl.5} parent=5 // pred_fallthru
      _
  $region6: #{_forward_impl.5} parent=0 // loop_footer
    %s13 = sadd.s32 1, %s9
  $region7: #{_forward_impl.5} parent=0 // loop_footer_branch
    %8 = sbr.rel target = $region3
  $region8: #{_forward_impl.5} parent=0 // loop_exit
    _

// kernel: _forward_impl.3
$region0: #{_forward_impl.3}
  #allocation0 [shape = 'u32[]', space=smem, size = 0x4, offset = 0x4, fixed_abs, tag = 'smem constant byte address 0x4 - core index']
  #allocation1 [shape = 'u32[72,128]{1,0:T(1,128)}', space=vmem, size = 0x9000, scoped, tag = 'internal scratch']
  %s0 = inlined_call_operand.vmem [shape: bf16[16,128], index: 0, kind: input, shape index: {}]
  %s1 = inlined_call_operand.hbm [shape: bf16[128,2304], index: 1, kind: input, shape index: {}]
  %s2 = inlined_call_operand.hbm [shape: f32[1,2304], index: 2, kind: input, shape index: {}]
  %s3 = inlined_call_operand.vmem [shape: bf16[16,2304], index: 3, kind: output, shape index: {}]
  %s4 = sld [smem:[#allocation0]]
  $region30: #{_forward_impl.3} parent=0
    _
  %s6 = ssub.s32 1, %s4
  %s7 = scalar_select 0, %s6, %s4
  $region1: #{_forward_impl.3} parent=0
    #allocation2 [shape = 'u8[589824]{0}', space=vmem, size = 0x90000, scoped, tag = 'input window, operand 1, single buffered']
    #allocation3 [shape = 's32[1]{0}', space=sflag, size = 0x4, scoped, tag = 'scoped memory for _forward_impl.3']
    #allocation4 [shape = 'u8[9216]{0}', space=vmem, size = 0x2400, scoped, tag = 'input window, operand 2, single buffered']
    #allocation5 [shape = 's32[1]{0}', space=sflag, size = 0x4, scoped, tag = 'scoped memory for _forward_impl.3']
    %8 = vsyncpa [#allocation3], 0
    %9 = vsyncpa [#allocation5], 0
    // Predicated region
    $region2: #{_forward_impl.3} parent=1 // pred_check
      _
    $region3: #{_forward_impl.3} parent=1 // pred_check_branch
      %11 = sbr.rel (0) target = $region5
    $region4: #{_forward_impl.3} parent=1 // pred_region
      _
    $region5: #{_forward_impl.3} parent=1 // pred_fallthru
      _
    // Predicated region
    $region6: #{_forward_impl.3} parent=1 // pred_check
      _
    $region7: #{_forward_impl.3} parent=1 // pred_check_branch
      %13 = sbr.rel (0) target = $region9
    $region8: #{_forward_impl.3} parent=1 // pred_region
      %15 = vsyncadd [#allocation3], 0
      %s16 = sshll.u32 %s1, 4
      %s17 = int_to_ptr.hbm [resolvable:$true] %s16
      %s18 = sshll.u32 [#allocation2], 4
      %s19 = int_to_ptr.vmem [resolvable:$true] %s18
      %24 = dma.hbm_to_vmem [thread:$0]  %s17, 18432, %s19, [#allocation3], 1152, 1152, 72
    $region9: #{_forward_impl.3} parent=1 // pred_fallthru
      _
    // Predicated region
    $region10: #{_forward_impl.3} parent=1 // pred_check
      _
    $region11: #{_forward_impl.3} parent=1 // pred_check_branch
      %26 = sbr.rel (0) target = $region13
    $region12: #{_forward_impl.3} parent=1 // pred_region
      %28 = vsyncadd [#allocation5], 0
      %s30 = sshll.u32 %s2, 4
      %s31 = int_to_ptr.hbm [resolvable:$true] %s30
      %s32 = sshll.u32 [#allocation4], 4
      %s33 = int_to_ptr.vmem [resolvable:$true] %s32
      %35 = dma.hbm_to_vmem [thread:$0]  %s31, 288, %s33, [#allocation5]
    $region13: #{_forward_impl.3} parent=1 // pred_fallthru
      _
    // Predicated region
    $region14: #{_forward_impl.3} parent=1 // pred_check
      _
    $region15: #{_forward_impl.3} parent=1 // pred_check_branch
      %37 = sbr.rel (0) target = $region17
    $region16: #{_forward_impl.3} parent=1 // pred_region
      %39 = dma.done [#allocation3], 18432
    $region17: #{_forward_impl.3} parent=1 // pred_fallthru
      _
    // Predicated region
    $region18: #{_forward_impl.3} parent=1 // pred_check
      _
    $region19: #{_forward_impl.3} parent=1 // pred_check_branch
      %41 = sbr.rel (0) target = $region21
    $region20: #{_forward_impl.3} parent=1 // pred_region
      %43 = dma.done [#allocation5], 288
    $region21: #{_forward_impl.3} parent=1 // pred_fallthru
      _
    %v44 = vld [vmem:[%s0] sm:$0xf]
    %v45 = vld [vmem:[%s0 + $0x4] sm:$0xf]
    %v46 = vld [vmem:[#allocation2] sm:$0xff]
    %v47 = vld [vmem:[#allocation2 + $0x8] sm:$0xff]
    %v48 = vld [vmem:[#allocation2 + $0x10] sm:$0xff]
    %v49 = vld [vmem:[#allocation2 + $0x18] sm:$0xff]
    %v50 = vld [vmem:[#allocation2 + $0x20] sm:$0xff]
    %v51 = vld [vmem:[#allocation2 + $0x28] sm:$0xff]
    %v52 = vld [vmem:[#allocation2 + $0x30] sm:$0xff]
    %v53 = vld [vmem:[#allocation2 + $0x38] sm:$0xff]
    %v54 = vld [vmem:[#allocation2 + $0x40] sm:$0xff]
    %v55 = vld [vmem:[#allocation2 + $0x48] sm:$0xff]
    %v56 = vld [vmem:[#allocation2 + $0x50] sm:$0xff]
    %v57 = vld [vmem:[#allocation2 + $0x58] sm:$0xff]
    %v58 = vld [vmem:[#allocation2 + $0x60] sm:$0xff]
    %v59 = vld [vmem:[#allocation2 + $0x68] sm:$0xff]
    %v60 = vld [vmem:[#allocation2 + $0x70] sm:$0xff]
    %v61 = vld [vmem:[#allocation2 + $0x78] sm:$0xff]
    %v62 = vld [vmem:[#allocation2 + $0x80] sm:$0xff]
    %v63 = vld [vmem:[#allocation2 + $0x88] sm:$0xff]
    %v64 = vld [vmem:[#allocation2 + $0x90] sm:$0xff]
    %v65 = vld [vmem:[#allocation2 + $0x98] sm:$0xff]
    %v66 = vld [vmem:[#allocation2 + $0xa0] sm:$0xff]
    %v67 = vld [vmem:[#allocation2 + $0xa8] sm:$0xff]
    %v68 = vld [vmem:[#allocation2 + $0xb0] sm:$0xff]
    %v69 = vld [vmem:[#allocation2 + $0xb8] sm:$0xff]
    %v70 = vld [vmem:[#allocation2 + $0xc0] sm:$0xff]
    %v71 = vld [vmem:[#allocation2 + $0xc8] sm:$0xff]
    %v72 = vld [vmem:[#allocation2 + $0xd0] sm:$0xff]
    %v73 = vld [vmem:[#allocation2 + $0xd8] sm:$0xff]
    %v74 = vld [vmem:[#allocation2 + $0xe0] sm:$0xff]
    %v75 = vld [vmem:[#allocation2 + $0xe8] sm:$0xff]
    %v76 = vld [vmem:[#allocation2 + $0xf0] sm:$0xff]
    %v77 = vld [vmem:[#allocation2 + $0xf8] sm:$0xff]
    %v78 = vld [vmem:[#allocation2 + $0x100] sm:$0xff]
    %v79 = vld [vmem:[#allocation2 + $0x108] sm:$0xff]
    %v80 = vld [vmem:[#allocation2 + $0x110] sm:$0xff]
    %v81 = vld [vmem:[#allocation2 + $0x118] sm:$0xff]
    %v82 = vld [vmem:[#allocation2 + $0x120] sm:$0xff]
    %v83 = vld [vmem:[#allocation2 + $0x128] sm:$0xff]
    %v84 = vld [vmem:[#allocation2 + $0x130] sm:$0xff]
    %v85 = vld [vmem:[#allocation2 + $0x138] sm:$0xff]
    %v86 = vld [vmem:[#allocation2 + $0x140] sm:$0xff]
    %v87 = vld [vmem:[#allocation2 + $0x148] sm:$0xff]
    %v88 = vld [vmem:[#allocation2 + $0x150] sm:$0xff]
    %v89 = vld [vmem:[#allocation2 + $0x158] sm:$0xff]
    %v90 = vld [vmem:[#allocation2 + $0x160] sm:$0xff]
    %v91 = vld [vmem:[#allocation2 + $0x168] sm:$0xff]
    %v92 = vld [vmem:[#allocation2 + $0x170] sm:$0xff]
    %v93 = vld [vmem:[#allocation2 + $0x178] sm:$0xff]
    %v94 = vld [vmem:[#allocation2 + $0x180] sm:$0xff]
    %v95 = vld [vmem:[#allocation2 + $0x188] sm:$0xff]
    %v96 = vld [vmem:[#allocation2 + $0x190] sm:$0xff]
    %v97 = vld [vmem:[#allocation2 + $0x198] sm:$0xff]
    %v98 = vld [vmem:[#allocation2 + $0x1a0] sm:$0xff]
    %v99 = vld [vmem:[#allocation2 + $0x1a8] sm:$0xff]
    %v100 = vld [vmem:[#allocation2 + $0x1b0] sm:$0xff]
    %v101 = vld [vmem:[#allocation2 + $0x1b8] sm:$0xff]
    %v102 = vld [vmem:[#allocation2 + $0x1c0] sm:$0xff]
    %v103 = vld [vmem:[#allocation2 + $0x1c8] sm:$0xff]
    %v104 = vld [vmem:[#allocation2 + $0x1d0] sm:$0xff]
    %v105 = vld [vmem:[#allocation2 + $0x1d8] sm:$0xff]
    %v106 = vld [vmem:[#allocation2 + $0x1e0] sm:$0xff]
    %v107 = vld [vmem:[#allocation2 + $0x1e8] sm:$0xff]
    %v108 = vld [vmem:[#allocation2 + $0x1f0] sm:$0xff]
    %v109 = vld [vmem:[#allocation2 + $0x1f8] sm:$0xff]
    %v110 = vld [vmem:[#allocation2 + $0x200] sm:$0xff]
    %v111 = vld [vmem:[#allocation2 + $0x208] sm:$0xff]
    %v112 = vld [vmem:[#allocation2 + $0x210] sm:$0xff]
    %v113 = vld [vmem:[#allocation2 + $0x218] sm:$0xff]
    %v114 = vld [vmem:[#allocation2 + $0x220] sm:$0xff]
    %v115 = vld [vmem:[#allocation2 + $0x228] sm:$0xff]
    %v116 = vld [vmem:[#allocation2 + $0x230] sm:$0xff]
    %v117 = vld [vmem:[#allocation2 + $0x238] sm:$0xff]
    %v118 = vld [vmem:[#allocation2 + $0x240] sm:$0xff]
    %v119 = vld [vmem:[#allocation2 + $0x248] sm:$0xff]
    %v120 = vld [vmem:[#allocation2 + $0x250] sm:$0xff]
    %v121 = vld [vmem:[#allocation2 + $0x258] sm:$0xff]
    %v122 = vld [vmem:[#allocation2 + $0x260] sm:$0xff]
    %v123 = vld [vmem:[#allocation2 + $0x268] sm:$0xff]
    %v124 = vld [vmem:[#allocation2 + $0x270] sm:$0xff]
    %v125 = vld [vmem:[#allocation2 + $0x278] sm:$0xff]
    %v126 = vld [vmem:[#allocation2 + $0x280] sm:$0xff]
    %v127 = vld [vmem:[#allocation2 + $0x288] sm:$0xff]
    %v128 = vld [vmem:[#allocation2 + $0x290] sm:$0xff]
    %v129 = vld [vmem:[#allocation2 + $0x298] sm:$0xff]
    %v130 = vld [vmem:[#allocation2 + $0x2a0] sm:$0xff]
    %v131 = vld [vmem:[#allocation2 + $0x2a8] sm:$0xff]
    %v132 = vld [vmem:[#allocation2 + $0x2b0] sm:$0xff]
    %v133 = vld [vmem:[#allocation2 + $0x2b8] sm:$0xff]
    %v134 = vld [vmem:[#allocation2 + $0x2c0] sm:$0xff]
    %v135 = vld [vmem:[#allocation2 + $0x2c8] sm:$0xff]
    %v136 = vld [vmem:[#allocation2 + $0x2d0] sm:$0xff]
    %v137 = vld [vmem:[#allocation2 + $0x2d8] sm:$0xff]
    %v138 = vld [vmem:[#allocation2 + $0x2e0] sm:$0xff]
    %v139 = vld [vmem:[#allocation2 + $0x2e8] sm:$0xff]
    %v140 = vld [vmem:[#allocation2 + $0x2f0] sm:$0xff]
    %v141 = vld [vmem:[#allocation2 + $0x2f8] sm:$0xff]
    %v142 = vld [vmem:[#allocation2 + $0x300] sm:$0xff]
    %v143 = vld [vmem:[#allocation2 + $0x308] sm:$0xff]
    %v144 = vld [vmem:[#allocation2 + $0x310] sm:$0xff]
    %v145 = vld [vmem:[#allocation2 + $0x318] sm:$0xff]
    %v146 = vld [vmem:[#allocation2 + $0x320] sm:$0xff]
    %v147 = vld [vmem:[#allocation2 + $0x328] sm:$0xff]
    %v148 = vld [vmem:[#allocation2 + $0x330] sm:$0xff]
    %v149 = vld [vmem:[#allocation2 + $0x338] sm:$0xff]
    %v150 = vld [vmem:[#allocation2 + $0x340] sm:$0xff]
    %v151 = vld [vmem:[#allocation2 + $0x348] sm:$0xff]
    %v152 = vld [vmem:[#allocation2 + $0x350] sm:$0xff]
    %v153 = vld [vmem:[#allocation2 + $0x358] sm:$0xff]
    %v154 = vld [vmem:[#allocation2 + $0x360] sm:$0xff]
    %v155 = vld [vmem:[#allocation2 + $0x368] sm:$0xff]
    %v156 = vld [vmem:[#allocation2 + $0x370] sm:$0xff]
    %v157 = vld [vmem:[#allocation2 + $0x378] sm:$0xff]
    %v158 = vld [vmem:[#allocation2 + $0x380] sm:$0xff]
    %v159 = vld [vmem:[#allocation2 + $0x388] sm:$0xff]
    %v160 = vld [vmem:[#allocation2 + $0x390] sm:$0xff]
    %v161 = vld [vmem:[#allocation2 + $0x398] sm:$0xff]
    %v162 = vld [vmem:[#allocation2 + $0x3a0] sm:$0xff]
    %v163 = vld [vmem:[#allocation2 + $0x3a8] sm:$0xff]
    %v164 = vld [vmem:[#allocation2 + $0x3b0] sm:$0xff]
    %v165 = vld [vmem:[#allocation2 + $0x3b8] sm:$0xff]
    %v166 = vld [vmem:[#allocation2 + $0x3c0] sm:$0xff]
    %v167 = vld [vmem:[#allocation2 + $0x3c8] sm:$0xff]
    %v168 = vld [vmem:[#allocation2 + $0x3d0] sm:$0xff]
    %v169 = vld [vmem:[#allocation2 + $0x3d8] sm:$0xff]
    %v170 = vld [vmem:[#allocation2 + $0x3e0] sm:$0xff]
    %v171 = vld [vmem:[#allocation2 + $0x3e8] sm:$0xff]
    %v172 = vld [vmem:[#allocation2 + $0x3f0] sm:$0xff]
    %v173 = vld [vmem:[#allocation2 + $0x3f8] sm:$0xff]
    %v174 = vld [vmem:[#allocation2 + $0x400] sm:$0xff]
    %v175 = vld [vmem:[#allocation2 + $0x408] sm:$0xff]
    %v176 = vld [vmem:[#allocation2 + $0x410] sm:$0xff]
    %v177 = vld [vmem:[#allocation2 + $0x418] sm:$0xff]
    %v178 = vld [vmem:[#allocation2 + $0x420] sm:$0xff]
    %v179 = vld [vmem:[#allocation2 + $0x428] sm:$0xff]
    %v180 = vld [vmem:[#allocation2 + $0x430] sm:$0xff]
    %v181 = vld [vmem:[#allocation2 + $0x438] sm:$0xff]
    %v182 = vld [vmem:[#allocation2 + $0x440] sm:$0xff]
    %v183 = vld [vmem:[#allocation2 + $0x448] sm:$0xff]
    %v184 = vld [vmem:[#allocation2 + $0x450] sm:$0xff]
    %v185 = vld [vmem:[#allocation2 + $0x458] sm:$0xff]
    %v186 = vld [vmem:[#allocation2 + $0x460] sm:$0xff]
    %v187 = vld [vmem:[#allocation2 + $0x468] sm:$0xff]
    %v188 = vld [vmem:[#allocation2 + $0x470] sm:$0xff]
    %v189 = vld [vmem:[#allocation2 + $0x478] sm:$0xff]
    %v190 = vld [vmem:[#allocation4] sm:$0xff]
    %v191 = vld [vmem:[#allocation4 + $0x8] sm:$0xff]
    %v192 = vld [vmem:[#allocation4 + $0x10] sm:$0x3]
    %v196 = vperm.slane %v190, 0
    %v197 = vperm.slane %v190, 1
    %v198 = vperm.slane %v190, 2
    %v199 = vperm.slane %v190, 3
    %v200 = vperm.slane %v190, 4
    %v201 = vperm.slane %v190, 5
    %v202 = vperm.slane %v190, 6
    %v203 = vperm.slane %v190, 7
    %v204 = vperm.slane %v191, 0
    %v205 = vperm.slane %v191, 1
    %v206 = vperm.slane %v191, 2
    %v207 = vperm.slane %v191, 3
    %v208 = vperm.slane %v191, 4
    %v209 = vperm.slane %v191, 5
    %v210 = vperm.slane %v191, 6
    %v211 = vperm.slane %v191, 7
    %v212 = vperm.slane %v192, 0
    %v213 = vperm.slane %v192, 1
    %v234 = vunpack.c.l.b16 %v44
    %v235 = vunpack.c.l.b16 %v45
    %v236 = vpack.c.b16 %v235, %v234
    %v382 = vunpack.c.l.b16 %v46
    %v383 = vunpack.c.h.b16 %v46
    %v384 = vunpack.c.l.b16 %v47
    %v385 = vunpack.c.h.b16 %v47
    %v386 = vunpack.c.l.b16 %v48
    %v387 = vunpack.c.h.b16 %v48
    %v388 = vunpack.c.l.b16 %v49
    %v389 = vunpack.c.h.b16 %v49
    %v390 = vunpack.c.l.b16 %v50
    %v391 = vunpack.c.h.b16 %v50
    %v392 = vunpack.c.l.b16 %v51
    %v393 = vunpack.c.h.b16 %v51
    %v394 = vunpack.c.l.b16 %v52
    %v395 = vunpack.c.h.b16 %v52
    %v396 = vunpack.c.l.b16 %v53
    %v397 = vunpack.c.h.b16 %v53
    %v398 = vunpack.c.l.b16 %v54
    %v399 = vunpack.c.h.b16 %v54
    %v400 = vunpack.c.l.b16 %v55
    %v401 = vunpack.c.h.b16 %v55
    %v402 = vunpack.c.l.b16 %v56
    %v403 = vunpack.c.h.b16 %v56
    %v404 = vunpack.c.l.b16 %v57
    %v405 = vunpack.c.h.b16 %v57
    %v406 = vunpack.c.l.b16 %v58
    %v407 = vunpack.c.h.b16 %v58
    %v408 = vunpack.c.l.b16 %v59
    %v409 = vunpack.c.h.b16 %v59
    %v410 = vunpack.c.l.b16 %v60
    %v411 = vunpack.c.h.b16 %v60
    %v412 = vunpack.c.l.b16 %v61
    %v413 = vunpack.c.h.b16 %v61
    %v414 = vunpack.c.l.b16 %v62
    %v415 = vunpack.c.h.b16 %v62
    %v416 = vunpack.c.l.b16 %v63
    %v417 = vunpack.c.h.b16 %v63
    %v418 = vunpack.c.l.b16 %v64
    %v419 = vunpack.c.h.b16 %v64
    %v420 = vunpack.c.l.b16 %v65
    %v421 = vunpack.c.h.b16 %v65
    %v422 = vunpack.c.l.b16 %v66
    %v423 = vunpack.c.h.b16 %v66
    %v424 = vunpack.c.l.b16 %v67
    %v425 = vunpack.c.h.b16 %v67
    %v426 = vunpack.c.l.b16 %v68
    %v427 = vunpack.c.h.b16 %v68
    %v428 = vunpack.c.l.b16 %v69
    %v429 = vunpack.c.h.b16 %v69
    %v430 = vunpack.c.l.b16 %v70
    %v431 = vunpack.c.h.b16 %v70
    %v432 = vunpack.c.l.b16 %v71
    %v433 = vunpack.c.h.b16 %v71
    %v434 = vunpack.c.l.b16 %v72
    %v435 = vunpack.c.h.b16 %v72
    %v436 = vunpack.c.l.b16 %v73
    %v437 = vunpack.c.h.b16 %v73
    %v438 = vunpack.c.l.b16 %v74
    %v439 = vunpack.c.h.b16 %v74
    %v440 = vunpack.c.l.b16 %v75
    %v441 = vunpack.c.h.b16 %v75
    %v442 = vunpack.c.l.b16 %v76
    %v443 = vunpack.c.h.b16 %v76
    %v444 = vunpack.c.l.b16 %v77
    %v445 = vunpack.c.h.b16 %v77
    %v446 = vunpack.c.l.b16 %v78
    %v447 = vunpack.c.h.b16 %v78
    %v448 = vunpack.c.l.b16 %v79
    %v449 = vunpack.c.h.b16 %v79
    %v450 = vunpack.c.l.b16 %v80
    %v451 = vunpack.c.h.b16 %v80
    %v452 = vunpack.c.l.b16 %v81
    %v453 = vunpack.c.h.b16 %v81
    %v454 = vunpack.c.l.b16 %v82
    %v455 = vunpack.c.h.b16 %v82
    %v456 = vunpack.c.l.b16 %v83
    %v457 = vunpack.c.h.b16 %v83
    %v458 = vunpack.c.l.b16 %v84
    %v459 = vunpack.c.h.b16 %v84
    %v460 = vunpack.c.l.b16 %v85
    %v461 = vunpack.c.h.b16 %v85
    %v462 = vunpack.c.l.b16 %v86
    %v463 = vunpack.c.h.b16 %v86
    %v464 = vunpack.c.l.b16 %v87
    %v465 = vunpack.c.h.b16 %v87
    %v466 = vunpack.c.l.b16 %v88
    %v467 = vunpack.c.h.b16 %v88
    %v468 = vunpack.c.l.b16 %v89
    %v469 = vunpack.c.h.b16 %v89
    %v470 = vunpack.c.l.b16 %v90
    %v471 = vunpack.c.h.b16 %v90
    %v472 = vunpack.c.l.b16 %v91
    %v473 = vunpack.c.h.b16 %v91
    %v474 = vunpack.c.l.b16 %v92
    %v475 = vunpack.c.h.b16 %v92
    %v476 = vunpack.c.l.b16 %v93
    %v477 = vunpack.c.h.b16 %v93
    %v478 = vunpack.c.l.b16 %v94
    %v479 = vunpack.c.h.b16 %v94
    %v480 = vunpack.c.l.b16 %v95
    %v481 = vunpack.c.h.b16 %v95
    %v482 = vunpack.c.l.b16 %v96
    %v483 = vunpack.c.h.b16 %v96
    %v484 = vunpack.c.l.b16 %v97
    %v485 = vunpack.c.h.b16 %v97
    %v486 = vunpack.c.l.b16 %v98
    %v487 = vunpack.c.h.b16 %v98
    %v488 = vunpack.c.l.b16 %v99
    %v489 = vunpack.c.h.b16 %v99
    %v490 = vunpack.c.l.b16 %v100
    %v491 = vunpack.c.h.b16 %v100
    %v492 = vunpack.c.l.b16 %v101
    %v493 = vunpack.c.h.b16 %v101
    %v494 = vunpack.c.l.b16 %v102
    %v495 = vunpack.c.h.b16 %v102
    %v496 = vunpack.c.l.b16 %v103
    %v497 = vunpack.c.h.b16 %v103
    %v498 = vunpack.c.l.b16 %v104
    %v499 = vunpack.c.h.b16 %v104
    %v500 = vunpack.c.l.b16 %v105
    %v501 = vunpack.c.h.b16 %v105
    %v502 = vunpack.c.l.b16 %v106
    %v503 = vunpack.c.h.b16 %v106
    %v504 = vunpack.c.l.b16 %v107
    %v505 = vunpack.c.h.b16 %v107
    %v506 = vunpack.c.l.b16 %v108
    %v507 = vunpack.c.h.b16 %v108
    %v508 = vunpack.c.l.b16 %v109
    %v509 = vunpack.c.h.b16 %v109
    %v510 = vunpack.c.l.b16 %v110
    %v511 = vunpack.c.h.b16 %v110
    %v512 = vunpack.c.l.b16 %v111
    %v513 = vunpack.c.h.b16 %v111
    %v514 = vunpack.c.l.b16 %v112
    %v515 = vunpack.c.h.b16 %v112
    %v516 = vunpack.c.l.b16 %v113
    %v517 = vunpack.c.h.b16 %v113
    %v518 = vunpack.c.l.b16 %v114
    %v519 = vunpack.c.h.b16 %v114
    %v520 = vunpack.c.l.b16 %v115
    %v521 = vunpack.c.h.b16 %v115
    %v522 = vunpack.c.l.b16 %v116
    %v523 = vunpack.c.h.b16 %v116
    %v524 = vunpack.c.l.b16 %v117
    %v525 = vunpack.c.h.b16 %v117
    %v526 = vunpack.c.l.b16 %v118
    %v527 = vunpack.c.h.b16 %v118
    %v528 = vunpack.c.l.b16 %v119
    %v529 = vunpack.c.h.b16 %v119
    %v530 = vunpack.c.l.b16 %v120
    %v531 = vunpack.c.h.b16 %v120
    %v532 = vunpack.c.l.b16 %v121
    %v533 = vunpack.c.h.b16 %v121
    %v534 = vunpack.c.l.b16 %v122
    %v535 = vunpack.c.h.b16 %v122
    %v536 = vunpack.c.l.b16 %v123
    %v537 = vunpack.c.h.b16 %v123
    %v538 = vunpack.c.l.b16 %v124
    %v539 = vunpack.c.h.b16 %v124
    %v540 = vunpack.c.l.b16 %v125
    %v541 = vunpack.c.h.b16 %v125
    %v542 = vunpack.c.l.b16 %v126
    %v543 = vunpack.c.h.b16 %v126
    %v544 = vunpack.c.l.b16 %v127
    %v545 = vunpack.c.h.b16 %v127
    %v546 = vunpack.c.l.b16 %v128
    %v547 = vunpack.c.h.b16 %v128
    %v548 = vunpack.c.l.b16 %v129
    %v549 = vunpack.c.h.b16 %v129
    %v550 = vunpack.c.l.b16 %v130
    %v551 = vunpack.c.h.b16 %v130
    %v552 = vunpack.c.l.b16 %v131
    %v553 = vunpack.c.h.b16 %v131
    %v554 = vunpack.c.l.b16 %v132
    %v555 = vunpack.c.h.b16 %v132
    %v556 = vunpack.c.l.b16 %v133
    %v557 = vunpack.c.h.b16 %v133
    %v558 = vunpack.c.l.b16 %v134
    %v559 = vunpack.c.h.b16 %v134
    %v560 = vunpack.c.l.b16 %v135
    %v561 = vunpack.c.h.b16 %v135
    %v562 = vunpack.c.l.b16 %v136
    %v563 = vunpack.c.h.b16 %v136
    %v564 = vunpack.c.l.b16 %v137
    %v565 = vunpack.c.h.b16 %v137
    %v566 = vunpack.c.l.b16 %v138
    %v567 = vunpack.c.h.b16 %v138
    %v568 = vunpack.c.l.b16 %v139
    %v569 = vunpack.c.h.b16 %v139
    %v570 = vunpack.c.l.b16 %v140
    %v571 = vunpack.c.h.b16 %v140
    %v572 = vunpack.c.l.b16 %v141
    %v573 = vunpack.c.h.b16 %v141
    %v574 = vunpack.c.l.b16 %v142
    %v575 = vunpack.c.h.b16 %v142
    %v576 = vunpack.c.l.b16 %v143
    %v577 = vunpack.c.h.b16 %v143
    %v578 = vunpack.c.l.b16 %v144
    %v579 = vunpack.c.h.b16 %v144
    %v580 = vunpack.c.l.b16 %v145
    %v581 = vunpack.c.h.b16 %v145
    %v582 = vunpack.c.l.b16 %v146
    %v583 = vunpack.c.h.b16 %v146
    %v584 = vunpack.c.l.b16 %v147
    %v585 = vunpack.c.h.b16 %v147
    %v586 = vunpack.c.l.b16 %v148
    %v587 = vunpack.c.h.b16 %v148
    %v588 = vunpack.c.l.b16 %v149
    %v589 = vunpack.c.h.b16 %v149
    %v590 = vunpack.c.l.b16 %v150
    %v591 = vunpack.c.h.b16 %v150
    %v592 = vunpack.c.l.b16 %v151
    %v593 = vunpack.c.h.b16 %v151
    %v594 = vunpack.c.l.b16 %v152
    %v595 = vunpack.c.h.b16 %v152
    %v596 = vunpack.c.l.b16 %v153
    %v597 = vunpack.c.h.b16 %v153
    %v598 = vunpack.c.l.b16 %v154
    %v599 = vunpack.c.h.b16 %v154
    %v600 = vunpack.c.l.b16 %v155
    %v601 = vunpack.c.h.b16 %v155
    %v602 = vunpack.c.l.b16 %v156
    %v603 = vunpack.c.h.b16 %v156
    %v604 = vunpack.c.l.b16 %v157
    %v605 = vunpack.c.h.b16 %v157
    %v606 = vunpack.c.l.b16 %v158
    %v607 = vunpack.c.h.b16 %v158
    %v608 = vunpack.c.l.b16 %v159
    %v609 = vunpack.c.h.b16 %v159
    %v610 = vunpack.c.l.b16 %v160
    %v611 = vunpack.c.h.b16 %v160
    %v612 = vunpack.c.l.b16 %v161
    %v613 = vunpack.c.h.b16 %v161
    %v614 = vunpack.c.l.b16 %v162
    %v615 = vunpack.c.h.b16 %v162
    %v616 = vunpack.c.l.b16 %v163
    %v617 = vunpack.c.h.b16 %v163
    %v618 = vunpack.c.l.b16 %v164
    %v619 = vunpack.c.h.b16 %v164
    %v620 = vunpack.c.l.b16 %v165
    %v621 = vunpack.c.h.b16 %v165
    %v622 = vunpack.c.l.b16 %v166
    %v623 = vunpack.c.h.b16 %v166
    %v624 = vunpack.c.l.b16 %v167
    %v625 = vunpack.c.h.b16 %v167
    %v626 = vunpack.c.l.b16 %v168
    %v627 = vunpack.c.h.b16 %v168
    %v628 = vunpack.c.l.b16 %v169
    %v629 = vunpack.c.h.b16 %v169
    %v630 = vunpack.c.l.b16 %v170
    %v631 = vunpack.c.h.b16 %v170
    %v632 = vunpack.c.l.b16 %v171
    %v633 = vunpack.c.h.b16 %v171
    %v634 = vunpack.c.l.b16 %v172
    %v635 = vunpack.c.h.b16 %v172
    %v636 = vunpack.c.l.b16 %v173
    %v637 = vunpack.c.h.b16 %v173
    %v638 = vunpack.c.l.b16 %v174
    %v639 = vunpack.c.h.b16 %v174
    %v640 = vunpack.c.l.b16 %v175
    %v641 = vunpack.c.h.b16 %v175
    %v642 = vunpack.c.l.b16 %v176
    %v643 = vunpack.c.h.b16 %v176
    %v644 = vunpack.c.l.b16 %v177
    %v645 = vunpack.c.h.b16 %v177
    %v646 = vunpack.c.l.b16 %v178
    %v647 = vunpack.c.h.b16 %v178
    %v648 = vunpack.c.l.b16 %v179
    %v649 = vunpack.c.h.b16 %v179
    %v650 = vunpack.c.l.b16 %v180
    %v651 = vunpack.c.h.b16 %v180
    %v652 = vunpack.c.l.b16 %v181
    %v653 = vunpack.c.h.b16 %v181
    %v654 = vunpack.c.l.b16 %v182
    %v655 = vunpack.c.h.b16 %v182
    %v656 = vunpack.c.l.b16 %v183
    %v657 = vunpack.c.h.b16 %v183
    %v658 = vunpack.c.l.b16 %v184
    %v659 = vunpack.c.h.b16 %v184
    %v660 = vunpack.c.l.b16 %v185
    %v661 = vunpack.c.h.b16 %v185
    %v662 = vunpack.c.l.b16 %v186
    %v663 = vunpack.c.h.b16 %v186
    %v664 = vunpack.c.l.b16 %v187
    %v665 = vunpack.c.h.b16 %v187
    %v666 = vunpack.c.l.b16 %v188
    %v667 = vunpack.c.h.b16 %v188
    %v668 = vunpack.c.l.b16 %v189
    %v669 = vunpack.c.h.b16 %v189
    %v670 = vpack.c.b16 %v400, %v382
    %v671 = vpack.c.b16 %v401, %v383
    %v672 = vpack.c.b16 %v402, %v384
    %v673 = vpack.c.b16 %v403, %v385
    %v674 = vpack.c.b16 %v404, %v386
    %v675 = vpack.c.b16 %v405, %v387
    %v676 = vpack.c.b16 %v406, %v388
    %v677 = vpack.c.b16 %v407, %v389
    %v678 = vpack.c.b16 %v408, %v390
    %v679 = vpack.c.b16 %v409, %v391
    %v680 = vpack.c.b16 %v410, %v392
    %v681 = vpack.c.b16 %v411, %v393
    %v682 = vpack.c.b16 %v412, %v394
    %v683 = vpack.c.b16 %v413, %v395
    %v684 = vpack.c.b16 %v414, %v396
    %v685 = vpack.c.b16 %v415, %v397
    %v686 = vpack.c.b16 %v416, %v398
    %v687 = vpack.c.b16 %v417, %v399
    %v688 = vpack.c.b16 %v436, %v418
    %v689 = vpack.c.b16 %v437, %v419
    %v690 = vpack.c.b16 %v438, %v420
    %v691 = vpack.c.b16 %v439, %v421
    %v692 = vpack.c.b16 %v440, %v422
    %v693 = vpack.c.b16 %v441, %v423
    %v694 = vpack.c.b16 %v442, %v424
    %v695 = vpack.c.b16 %v443, %v425
    %v696 = vpack.c.b16 %v444, %v426
    %v697 = vpack.c.b16 %v445, %v427
    %v698 = vpack.c.b16 %v446, %v428
    %v699 = vpack.c.b16 %v447, %v429
    %v700 = vpack.c.b16 %v448, %v430
    %v701 = vpack.c.b16 %v449, %v431
    %v702 = vpack.c.b16 %v450, %v432
    %v703 = vpack.c.b16 %v451, %v433
    %v704 = vpack.c.b16 %v452, %v434
    %v705 = vpack.c.b16 %v453, %v435
    %v706 = vpack.c.b16 %v472, %v454
    %v707 = vpack.c.b16 %v473, %v455
    %v708 = vpack.c.b16 %v474, %v456
    %v709 = vpack.c.b16 %v475, %v457
    %v710 = vpack.c.b16 %v476, %v458
    %v711 = vpack.c.b16 %v477, %v459
    %v712 = vpack.c.b16 %v478, %v460
    %v713 = vpack.c.b16 %v479, %v461
    %v714 = vpack.c.b16 %v480, %v462
    %v715 = vpack.c.b16 %v481, %v463
    %v716 = vpack.c.b16 %v482, %v464
    %v717 = vpack.c.b16 %v483, %v465
    %v718 = vpack.c.b16 %v484, %v466
    %v719 = vpack.c.b16 %v485, %v467
    %v720 = vpack.c.b16 %v486, %v468
    %v721 = vpack.c.b16 %v487, %v469
    %v722 = vpack.c.b16 %v488, %v470
    %v723 = vpack.c.b16 %v489, %v471
    %v724 = vpack.c.b16 %v508, %v490
    %v725 = vpack.c.b16 %v509, %v491
    %v726 = vpack.c.b16 %v510, %v492
    %v727 = vpack.c.b16 %v511, %v493
    %v728 = vpack.c.b16 %v512, %v494
    %v729 = vpack.c.b16 %v513, %v495
    %v730 = vpack.c.b16 %v514, %v496
    %v731 = vpack.c.b16 %v515, %v497
    %v732 = vpack.c.b16 %v516, %v498
    %v733 = vpack.c.b16 %v517, %v499
    %v734 = vpack.c.b16 %v518, %v500
    %v735 = vpack.c.b16 %v519, %v501
    %v736 = vpack.c.b16 %v520, %v502
    %v737 = vpack.c.b16 %v521, %v503
    %v738 = vpack.c.b16 %v522, %v504
    %v739 = vpack.c.b16 %v523, %v505
    %v740 = vpack.c.b16 %v524, %v506
    %v741 = vpack.c.b16 %v525, %v507
    %v742 = vpack.c.b16 %v544, %v526
    %v743 = vpack.c.b16 %v545, %v527
    %v744 = vpack.c.b16 %v546, %v528
    %v745 = vpack.c.b16 %v547, %v529
    %v746 = vpack.c.b16 %v548, %v530
    %v747 = vpack.c.b16 %v549, %v531
    %v748 = vpack.c.b16 %v550, %v532
    %v749 = vpack.c.b16 %v551, %v533
    %v750 = vpack.c.b16 %v552, %v534
    %v751 = vpack.c.b16 %v553, %v535
    %v752 = vpack.c.b16 %v554, %v536
    %v753 = vpack.c.b16 %v555, %v537
    %v754 = vpack.c.b16 %v556, %v538
    %v755 = vpack.c.b16 %v557, %v539
    %v756 = vpack.c.b16 %v558, %v540
    %v757 = vpack.c.b16 %v559, %v541
    %v758 = vpack.c.b16 %v560, %v542
    %v759 = vpack.c.b16 %v561, %v543
    %v760 = vpack.c.b16 %v580, %v562
    %v761 = vpack.c.b16 %v581, %v563
    %v762 = vpack.c.b16 %v582, %v564
    %v763 = vpack.c.b16 %v583, %v565
    %v764 = vpack.c.b16 %v584, %v566
    %v765 = vpack.c.b16 %v585, %v567
    %v766 = vpack.c.b16 %v586, %v568
    %v767 = vpack.c.b16 %v587, %v569
    %v768 = vpack.c.b16 %v588, %v570
    %v769 = vpack.c.b16 %v589, %v571
    %v770 = vpack.c.b16 %v590, %v572
    %v771 = vpack.c.b16 %v591, %v573
    %v772 = vpack.c.b16 %v592, %v574
    %v773 = vpack.c.b16 %v593, %v575
    %v774 = vpack.c.b16 %v594, %v576
    %v775 = vpack.c.b16 %v595, %v577
    %v776 = vpack.c.b16 %v596, %v578
    %v777 = vpack.c.b16 %v597, %v579
    %v778 = vpack.c.b16 %v616, %v598
    %v779 = vpack.c.b16 %v617, %v599
    %v780 = vpack.c.b16 %v618, %v600
    %v781 = vpack.c.b16 %v619, %v601
    %v782 = vpack.c.b16 %v620, %v602
    %v783 = vpack.c.b16 %v621, %v603
    %v784 = vpack.c.b16 %v622, %v604
    %v785 = vpack.c.b16 %v623, %v605
    %v786 = vpack.c.b16 %v624, %v606
    %v787 = vpack.c.b16 %v625, %v607
    %v788 = vpack.c.b16 %v626, %v608
    %v789 = vpack.c.b16 %v627, %v609
    %v790 = vpack.c.b16 %v628, %v610
    %v791 = vpack.c.b16 %v629, %v611
    %v792 = vpack.c.b16 %v630, %v612
    %v793 = vpack.c.b16 %v631, %v613
    %v794 = vpack.c.b16 %v632, %v614
    %v795 = vpack.c.b16 %v633, %v615
    %v796 = vpack.c.b16 %v652, %v634
    %v797 = vpack.c.b16 %v653, %v635
    %v798 = vpack.c.b16 %v654, %v636
    %v799 = vpack.c.b16 %v655, %v637
    %v800 = vpack.c.b16 %v656, %v638
    %v801 = vpack.c.b16 %v657, %v639
    %v802 = vpack.c.b16 %v658, %v640
    %v803 = vpack.c.b16 %v659, %v641
    %v804 = vpack.c.b16 %v660, %v642
    %v805 = vpack.c.b16 %v661, %v643
    %v806 = vpack.c.b16 %v662, %v644
    %v807 = vpack.c.b16 %v663, %v645
    %v808 = vpack.c.b16 %v664, %v646
    %v809 = vpack.c.b16 %v665, %v647
    %v810 = vpack.c.b16 %v666, %v648
    %v811 = vpack.c.b16 %v667, %v649
    %v812 = vpack.c.b16 %v668, %v650
    %v813 = vpack.c.b16 %v669, %v651
    %958 = vmatpush.bf16.msra.mxu0 %v796
    %959 = vmatpush.bf16.msra.mxu0 %v778
    %960 = vmatpush.bf16.msra.mxu0 %v760
    %961 = vmatpush.bf16.msra.mxu0 %v742
    %962 = vmatpush.bf16.msra.mxu0 %v724
    %963 = vmatpush.bf16.msra.mxu0 %v706
    %964 = vmatpush.bf16.msra.mxu0 %v688
    %965 = vmatpush.bf16.msra.mxu0 %v670
    %966 = vmatmul.bf16.gmra.mxu0 %v236
    %v967 = vpop.f32.mrf.mxu0
    %v968 = vadd.f32 %v196, %v967
    %v969 = vpop.f32.mrf.mxu0
    %v970 = vadd.f32 %v196, %v969
    %971 = vdwg.mxu0
    %972 = vmatpush.bf16.msra.mxu0 %v797
    %973 = vmatpush.bf16.msra.mxu0 %v779
    %974 = vmatpush.bf16.msra.mxu0 %v761
    %975 = vmatpush.bf16.msra.mxu0 %v743
    %976 = vmatpush.bf16.msra.mxu0 %v725
    %977 = vmatpush.bf16.msra.mxu0 %v707
    %978 = vmatpush.bf16.msra.mxu0 %v689
    %979 = vmatpush.bf16.msra.mxu0 %v671
    %980 = vmatmul.bf16.gmra.mxu0 %v236
    %v981 = vpop.f32.mrf.mxu0
    %v982 = vadd.f32 %v197, %v981
    %v983 = vpop.f32.mrf.mxu0
    %v984 = vadd.f32 %v197, %v983
    %985 = vdwg.mxu0
    %986 = vmatpush.bf16.msra.mxu0 %v798
    %987 = vmatpush.bf16.msra.mxu0 %v780
    %988 = vmatpush.bf16.msra.mxu0 %v762
    %989 = vmatpush.bf16.msra.mxu0 %v744
    %990 = vmatpush.bf16.msra.mxu0 %v726
    %991 = vmatpush.bf16.msra.mxu0 %v708
    %992 = vmatpush.bf16.msra.mxu0 %v690
    %993 = vmatpush.bf16.msra.mxu0 %v672
    %994 = vmatmul.bf16.gmra.mxu0 %v236
    %v995 = vpop.f32.mrf.mxu0
    %v996 = vadd.f32 %v198, %v995
    %v997 = vpop.f32.mrf.mxu0
    %v998 = vadd.f32 %v198, %v997
    %999 = vdwg.mxu0
    %1000 = vmatpush.bf16.msra.mxu0 %v799
    %1001 = vmatpush.bf16.msra.mxu0 %v781
    %1002 = vmatpush.bf16.msra.mxu0 %v763
    %1003 = vmatpush.bf16.msra.mxu0 %v745
    %1004 = vmatpush.bf16.msra.mxu0 %v727
    %1005 = vmatpush.bf16.msra.mxu0 %v709
    %1006 = vmatpush.bf16.msra.mxu0 %v691
    %1007 = vmatpush.bf16.msra.mxu0 %v673
    %1008 = vmatmul.bf16.gmra.mxu0 %v236
    %v1009 = vpop.f32.mrf.mxu0
    %v1010 = vadd.f32 %v199, %v1009
    %v1011 = vpop.f32.mrf.mxu0
    %v1012 = vadd.f32 %v199, %v1011
    %1013 = vdwg.mxu0
    %1014 = vmatpush.bf16.msra.mxu0 %v800
    %1015 = vmatpush.bf16.msra.mxu0 %v782
    %1016 = vmatpush.bf16.msra.mxu0 %v764
    %1017 = vmatpush.bf16.msra.mxu0 %v746
    %1018 = vmatpush.bf16.msra.mxu0 %v728
    %1019 = vmatpush.bf16.msra.mxu0 %v710
    %1020 = vmatpush.bf16.msra.mxu0 %v692
    %1021 = vmatpush.bf16.msra.mxu0 %v674
    %1022 = vmatmul.bf16.gmra.mxu0 %v236
    %v1023 = vpop.f32.mrf.mxu0
    %v1024 = vadd.f32 %v200, %v1023
    %v1025 = vpop.f32.mrf.mxu0
    %v1026 = vadd.f32 %v200, %v1025
    %1027 = vdwg.mxu0
    %1028 = vmatpush.bf16.msra.mxu0 %v801
    %1029 = vmatpush.bf16.msra.mxu0 %v783
    %1030 = vmatpush.bf16.msra.mxu0 %v765
    %1031 = vmatpush.bf16.msra.mxu0 %v747
    %1032 = vmatpush.bf16.msra.mxu0 %v729
    %1033 = vmatpush.bf16.msra.mxu0 %v711
    %1034 = vmatpush.bf16.msra.mxu0 %v693
    %1035 = vmatpush.bf16.msra.mxu0 %v675
    %1036 = vmatmul.bf16.gmra.mxu0 %v236
    %v1037 = vpop.f32.mrf.mxu0
    %v1038 = vadd.f32 %v201, %v1037
    %v1039 = vpop.f32.mrf.mxu0
    %v1040 = vadd.f32 %v201, %v1039
    %1041 = vdwg.mxu0
    %1042 = vmatpush.bf16.msra.mxu0 %v802
    %1043 = vmatpush.bf16.msra.mxu0 %v784
    %1044 = vmatpush.bf16.msra.mxu0 %v766
    %1045 = vmatpush.bf16.msra.mxu0 %v748
    %1046 = vmatpush.bf16.msra.mxu0 %v730
    %1047 = vmatpush.bf16.msra.mxu0 %v712
    %1048 = vmatpush.bf16.msra.mxu0 %v694
    %1049 = vmatpush.bf16.msra.mxu0 %v676
    %1050 = vmatmul.bf16.gmra.mxu0 %v236
    %v1051 = vpop.f32.mrf.mxu0
    %v1052 = vadd.f32 %v202, %v1051
    %v1053 = vpop.f32.mrf.mxu0
    %v1054 = vadd.f32 %v202, %v1053
    %1055 = vdwg.mxu0
    %1056 = vmatpush.bf16.msra.mxu0 %v803
    %1057 = vmatpush.bf16.msra.mxu0 %v785
    %1058 = vmatpush.bf16.msra.mxu0 %v767
    %1059 = vmatpush.bf16.msra.mxu0 %v749
    %1060 = vmatpush.bf16.msra.mxu0 %v731
    %1061 = vmatpush.bf16.msra.mxu0 %v713
    %1062 = vmatpush.bf16.msra.mxu0 %v695
    %1063 = vmatpush.bf16.msra.mxu0 %v677
    %1064 = vmatmul.bf16.gmra.mxu0 %v236
    %v1065 = vpop.f32.mrf.mxu0
    %v1066 = vadd.f32 %v203, %v1065
    %v1067 = vpop.f32.mrf.mxu0
    %v1068 = vadd.f32 %v203, %v1067
    %1069 = vdwg.mxu0
    %1070 = vmatpush.bf16.msra.mxu0 %v804
    %1071 = vmatpush.bf16.msra.mxu0 %v786
    %1072 = vmatpush.bf16.msra.mxu0 %v768
    %1073 = vmatpush.bf16.msra.mxu0 %v750
    %1074 = vmatpush.bf16.msra.mxu0 %v732
    %1075 = vmatpush.bf16.msra.mxu0 %v714
    %1076 = vmatpush.bf16.msra.mxu0 %v696
    %1077 = vmatpush.bf16.msra.mxu0 %v678
    %1078 = vmatmul.bf16.gmra.mxu0 %v236
    %v1079 = vpop.f32.mrf.mxu0
    %v1080 = vadd.f32 %v204, %v1079
    %v1081 = vpop.f32.mrf.mxu0
    %v1082 = vadd.f32 %v204, %v1081
    %1083 = vdwg.mxu0
    %1084 = vmatpush.bf16.msra.mxu0 %v805
    %1085 = vmatpush.bf16.msra.mxu0 %v787
    %1086 = vmatpush.bf16.msra.mxu0 %v769
    %1087 = vmatpush.bf16.msra.mxu0 %v751
    %1088 = vmatpush.bf16.msra.mxu0 %v733
    %1089 = vmatpush.bf16.msra.mxu0 %v715
    %1090 = vmatpush.bf16.msra.mxu0 %v697
    %1091 = vmatpush.bf16.msra.mxu0 %v679
    %1092 = vmatmul.bf16.gmra.mxu0 %v236
    %v1093 = vpop.f32.mrf.mxu0
    %v1094 = vadd.f32 %v205, %v1093
    %v1095 = vpop.f32.mrf.mxu0
    %v1096 = vadd.f32 %v205, %v1095
    %1097 = vdwg.mxu0
    %1098 = vmatpush.bf16.msra.mxu0 %v806
    %1099 = vmatpush.bf16.msra.mxu0 %v788
    %1100 = vmatpush.bf16.msra.mxu0 %v770
    %1101 = vmatpush.bf16.msra.mxu0 %v752
    %1102 = vmatpush.bf16.msra.mxu0 %v734
    %1103 = vmatpush.bf16.msra.mxu0 %v716
    %1104 = vmatpush.bf16.msra.mxu0 %v698
    %1105 = vmatpush.bf16.msra.mxu0 %v680
    %1106 = vmatmul.bf16.gmra.mxu0 %v236
    %v1107 = vpop.f32.mrf.mxu0
    %v1108 = vadd.f32 %v206, %v1107
    %v1109 = vpop.f32.mrf.mxu0
    %v1110 = vadd.f32 %v206, %v1109
    %1111 = vdwg.mxu0
    %1112 = vmatpush.bf16.msra.mxu0 %v807
    %1113 = vmatpush.bf16.msra.mxu0 %v789
    %1114 = vmatpush.bf16.msra.mxu0 %v771
    %1115 = vmatpush.bf16.msra.mxu0 %v753
    %1116 = vmatpush.bf16.msra.mxu0 %v735
    %1117 = vmatpush.bf16.msra.mxu0 %v717
    %1118 = vmatpush.bf16.msra.mxu0 %v699
    %1119 = vmatpush.bf16.msra.mxu0 %v681
    %1120 = vmatmul.bf16.gmra.mxu0 %v236
    %v1121 = vpop.f32.mrf.mxu0
    %v1122 = vadd.f32 %v207, %v1121
    %v1123 = vpop.f32.mrf.mxu0
    %v1124 = vadd.f32 %v207, %v1123
    %1125 = vdwg.mxu0
    %1126 = vmatpush.bf16.msra.mxu0 %v808
    %1127 = vmatpush.bf16.msra.mxu0 %v790
    %1128 = vmatpush.bf16.msra.mxu0 %v772
    %1129 = vmatpush.bf16.msra.mxu0 %v754
    %1130 = vmatpush.bf16.msra.mxu0 %v736
    %1131 = vmatpush.bf16.msra.mxu0 %v718
    %1132 = vmatpush.bf16.msra.mxu0 %v700
    %1133 = vmatpush.bf16.msra.mxu0 %v682
    %1134 = vmatmul.bf16.gmra.mxu0 %v236
    %v1135 = vpop.f32.mrf.mxu0
    %v1136 = vadd.f32 %v208, %v1135
    %v1137 = vpop.f32.mrf.mxu0
    %v1138 = vadd.f32 %v208, %v1137
    %1139 = vdwg.mxu0
    %1140 = vmatpush.bf16.msra.mxu0 %v809
    %1141 = vmatpush.bf16.msra.mxu0 %v791
    %1142 = vmatpush.bf16.msra.mxu0 %v773
    %1143 = vmatpush.bf16.msra.mxu0 %v755
    %1144 = vmatpush.bf16.msra.mxu0 %v737
    %1145 = vmatpush.bf16.msra.mxu0 %v719
    %1146 = vmatpush.bf16.msra.mxu0 %v701
    %1147 = vmatpush.bf16.msra.mxu0 %v683
    %1148 = vmatmul.bf16.gmra.mxu0 %v236
    %v1149 = vpop.f32.mrf.mxu0
    %v1150 = vadd.f32 %v209, %v1149
    %v1151 = vpop.f32.mrf.mxu0
    %v1152 = vadd.f32 %v209, %v1151
    %1153 = vdwg.mxu0
    %1154 = vmatpush.bf16.msra.mxu0 %v810
    %1155 = vmatpush.bf16.msra.mxu0 %v792
    %1156 = vmatpush.bf16.msra.mxu0 %v774
    %1157 = vmatpush.bf16.msra.mxu0 %v756
    %1158 = vmatpush.bf16.msra.mxu0 %v738
    %1159 = vmatpush.bf16.msra.mxu0 %v720
    %1160 = vmatpush.bf16.msra.mxu0 %v702
    %1161 = vmatpush.bf16.msra.mxu0 %v684
    %1162 = vmatmul.bf16.gmra.mxu0 %v236
    %v1163 = vpop.f32.mrf.mxu0
    %v1164 = vadd.f32 %v210, %v1163
    %v1165 = vpop.f32.mrf.mxu0
    %v1166 = vadd.f32 %v210, %v1165
    %1167 = vdwg.mxu0
    %1168 = vmatpush.bf16.msra.mxu0 %v811
    %1169 = vmatpush.bf16.msra.mxu0 %v793
    %1170 = vmatpush.bf16.msra.mxu0 %v775
    %1171 = vmatpush.bf16.msra.mxu0 %v757
    %1172 = vmatpush.bf16.msra.mxu0 %v739
    %1173 = vmatpush.bf16.msra.mxu0 %v721
    %1174 = vmatpush.bf16.msra.mxu0 %v703
    %1175 = vmatpush.bf16.msra.mxu0 %v685
    %1176 = vmatmul.bf16.gmra.mxu0 %v236
    %v1177 = vpop.f32.mrf.mxu0
    %v1178 = vadd.f32 %v211, %v1177
    %v1179 = vpop.f32.mrf.mxu0
    %v1180 = vadd.f32 %v211, %v1179
    %1181 = vdwg.mxu0
    %1182 = vmatpush.bf16.msra.mxu0 %v812
    %1183 = vmatpush.bf16.msra.mxu0 %v794
    %1184 = vmatpush.bf16.msra.mxu0 %v776
    %1185 = vmatpush.bf16.msra.mxu0 %v758
    %1186 = vmatpush.bf16.msra.mxu0 %v740
    %1187 = vmatpush.bf16.msra.mxu0 %v722
    %1188 = vmatpush.bf16.msra.mxu0 %v704
    %1189 = vmatpush.bf16.msra.mxu0 %v686
    %1190 = vmatmul.bf16.gmra.mxu0 %v236
    %v1191 = vpop.f32.mrf.mxu0
    %v1192 = vadd.f32 %v212, %v1191
    %v1193 = vpop.f32.mrf.mxu0
    %v1194 = vadd.f32 %v212, %v1193
    %1195 = vdwg.mxu0
    %1196 = vmatpush.bf16.msra.mxu0 %v813
    %1197 = vmatpush.bf16.msra.mxu0 %v795
    %1198 = vmatpush.bf16.msra.mxu0 %v777
    %1199 = vmatpush.bf16.msra.mxu0 %v759
    %1200 = vmatpush.bf16.msra.mxu0 %v741
    %1201 = vmatpush.bf16.msra.mxu0 %v723
    %1202 = vmatpush.bf16.msra.mxu0 %v705
    %1203 = vmatpush.bf16.msra.mxu0 %v687
    %1204 = vmatmul.bf16.gmra.mxu0 %v236
    %v1205 = vpop.f32.mrf.mxu0
    %v1206 = vadd.f32 %v213, %v1205
    %v1207 = vpop.f32.mrf.mxu0
    %v1208 = vadd.f32 %v213, %v1207
    %1209 = vdwg.mxu0
    %v1210 = vmax.f32 %v968, 0.0
    %v1211 = vmax.f32 %v982, 0.0
    %v1212 = vmax.f32 %v996, 0.0
    %v1213 = vmax.f32 %v1010, 0.0
    %v1214 = vmax.f32 %v1024, 0.0
    %v1215 = vmax.f32 %v1038, 0.0
    %v1216 = vmax.f32 %v1052, 0.0
    %v1217 = vmax.f32 %v1066, 0.0
    %v1218 = vmax.f32 %v1080, 0.0
    %v1219 = vmax.f32 %v1094, 0.0
    %v1220 = vmax.f32 %v1108, 0.0
    %v1221 = vmax.f32 %v1122, 0.0
    %v1222 = vmax.f32 %v1136, 0.0
    %v1223 = vmax.f32 %v1150, 0.0
    %v1224 = vmax.f32 %v1164, 0.0
    %v1225 = vmax.f32 %v1178, 0.0
    %v1226 = vmax.f32 %v1192, 0.0
    %v1227 = vmax.f32 %v1206, 0.0
    %v1228 = vmax.f32 %v970, 0.0
    %v1229 = vmax.f32 %v984, 0.0
    %v1230 = vmax.f32 %v998, 0.0
    %v1231 = vmax.f32 %v1012, 0.0
    %v1232 = vmax.f32 %v1026, 0.0
    %v1233 = vmax.f32 %v1040, 0.0
    %v1234 = vmax.f32 %v1054, 0.0
    %v1235 = vmax.f32 %v1068, 0.0
    %v1236 = vmax.f32 %v1082, 0.0
    %v1237 = vmax.f32 %v1096, 0.0
    %v1238 = vmax.f32 %v1110, 0.0
    %v1239 = vmax.f32 %v1124, 0.0
    %v1240 = vmax.f32 %v1138, 0.0
    %v1241 = vmax.f32 %v1152, 0.0
    %v1242 = vmax.f32 %v1166, 0.0
    %v1243 = vmax.f32 %v1180, 0.0
    %v1244 = vmax.f32 %v1194, 0.0
    %v1245 = vmax.f32 %v1208, 0.0
    %v1246 = vpack.c.bf16 %v1211, %v1210
    %v1247 = vpack.c.bf16 %v1213, %v1212
    %v1248 = vpack.c.bf16 %v1215, %v1214
    %v1249 = vpack.c.bf16 %v1217, %v1216
    %v1250 = vpack.c.bf16 %v1219, %v1218
    %v1251 = vpack.c.bf16 %v1221, %v1220
    %v1252 = vpack.c.bf16 %v1223, %v1222
    %v1253 = vpack.c.bf16 %v1225, %v1224
    %v1254 = vpack.c.bf16 %v1227, %v1226
    %v1255 = vpack.c.bf16 %v1229, %v1228
    %v1256 = vpack.c.bf16 %v1231, %v1230
    %v1257 = vpack.c.bf16 %v1233, %v1232
    %v1258 = vpack.c.bf16 %v1235, %v1234
    %v1259 = vpack.c.bf16 %v1237, %v1236
    %v1260 = vpack.c.bf16 %v1239, %v1238
    %v1261 = vpack.c.bf16 %v1241, %v1240
    %v1262 = vpack.c.bf16 %v1243, %v1242
    %v1263 = vpack.c.bf16 %v1245, %v1244
    %1264 = vst [vmem:[%s3] sm:$0xff] %v1246
    %1265 = vst [vmem:[%s3 + $0x8] sm:$0xff] %v1247
    %1266 = vst [vmem:[%s3 + $0x10] sm:$0xff] %v1248
    %1267 = vst [vmem:[%s3 + $0x18] sm:$0xff] %v1249
    %1268 = vst [vmem:[%s3 + $0x20] sm:$0xff] %v1250
    %1269 = vst [vmem:[%s3 + $0x28] sm:$0xff] %v1251
    %1270 = vst [vmem:[%s3 + $0x30] sm:$0xff] %v1252
    %1271 = vst [vmem:[%s3 + $0x38] sm:$0xff] %v1253
    %1272 = vst [vmem:[%s3 + $0x40] sm:$0xff] %v1254
    %1273 = vst [vmem:[%s3 + $0x48] sm:$0xff] %v1255
    %1274 = vst [vmem:[%s3 + $0x50] sm:$0xff] %v1256
    %1275 = vst [vmem:[%s3 + $0x58] sm:$0xff] %v1257
    %1276 = vst [vmem:[%s3 + $0x60] sm:$0xff] %v1258
    %1277 = vst [vmem:[%s3 + $0x68] sm:$0xff] %v1259
    %1278 = vst [vmem:[%s3 + $0x70] sm:$0xff] %v1260
    %1279 = vst [vmem:[%s3 + $0x78] sm:$0xff] %v1261
    %1280 = vst [vmem:[%s3 + $0x80] sm:$0xff] %v1262
    %1281 = vst [vmem:[%s3 + $0x88] sm:$0xff] %v1263
    // Predicated region
    $region22: #{_forward_impl.3} parent=1 // pred_check
      _
    $region23: #{_forward_impl.3} parent=1 // pred_check_branch
      %1283 = sbr.rel (0) target = $region25
    $region24: #{_forward_impl.3} parent=1 // pred_region
      _
    $region25: #{_forward_impl.3} parent=1 // pred_fallthru
      _
    // Predicated region
    $region26: #{_forward_impl.3} parent=1 // pred_check
      _
    $region27: #{_forward_impl.3} parent=1 // pred_check_branch
      %1285 = sbr.rel (0) target = $region29
    $region28: #{_forward_impl.3} parent=1 // pred_region
      _
    $region29: #{_forward_impl.3} parent=1 // pred_fallthru
      _
    %1286 = vsyncpa [#allocation3], 1
    %1287 = vsyncpa [#allocation5], 1

</llo_original>
